<compile_context>
chip_gen: v7x
topology: tpu7x:2x2x1
jax: 0.10.0
libtpu: 0.0.40
codegen_flags: <defaults>
</compile_context>

<pallas_src>
import math
import functools

import jax
import jax.numpy as jnp
from jax import lax
from jax.experimental import pallas as pl
from jax.experimental.pallas import tpu as pltpu

_LN_EPS = 1e-5  # nn.LayerNorm default


def _layer_norm(v, gamma, beta):
    mu = jnp.mean(v, axis=-1, keepdims=True)
    var = jnp.mean((v - mu) * (v - mu), axis=-1, keepdims=True)
    return (v - mu) * lax.rsqrt(var + _LN_EPS) * gamma + beta


def _encoder_layer_kernel(
    x_ref, mask_ref,
    ln1_g_ref, ln1_b_ref,
    wq_ref, bq_ref, wk_ref, bk_ref, wv_ref, bv_ref, wo_ref, bo_ref,
    ln2_g_ref, ln2_b_ref,
    w1_ref, b1_ref, w2_ref, b2_ref,
    o_ref,
    *, nhead: int):
    x = x_ref[0].astype(jnp.float32)                 # (S, D) — current batch element
    S, D = x.shape
    hd = D // nhead
    inv_sqrt_hd = jnp.float32(1.0 / math.sqrt(hd))

    # ---- sublayer 1: x + SelfAttention(LayerNorm(x)) ----
    xn = _layer_norm(x, ln1_g_ref[...], ln1_b_ref[...])
    q = jnp.dot(xn, wq_ref[...], preferred_element_type=jnp.float32) + bq_ref[...]
    k = jnp.dot(xn, wk_ref[...], preferred_element_type=jnp.float32) + bk_ref[...]
    v = jnp.dot(xn, wv_ref[...], preferred_element_type=jnp.float32) + bv_ref[...]

    mask_row = mask_ref[0]                           # (1, S): 1.0 attend, 0.0 masked
    head_outs = []
    for h in range(nhead):                           # static (unrolled) loop over heads
        lo, hi = h * hd, (h + 1) * hd
        qh, kh, vh = q[:, lo:hi], k[:, lo:hi], v[:, lo:hi]
        s = jnp.dot(qh, kh.T, preferred_element_type=jnp.float32) * inv_sqrt_hd  # (S, S)
        s = jnp.where(mask_row == 0.0, jnp.float32(-1e9), s)
        s = s - jnp.max(s, axis=-1, keepdims=True)   # stable softmax
        p = jnp.exp(s)
        p = p / jnp.sum(p, axis=-1, keepdims=True)
        head_outs.append(jnp.dot(p, vh, preferred_element_type=jnp.float32))
    ctx = jnp.concatenate(head_outs, axis=-1)        # (S, D)
    attn = jnp.dot(ctx, wo_ref[...], preferred_element_type=jnp.float32) + bo_ref[...]
    # TODO(synk): training-mode dropout (on attn weights and residual branches) needs
    # pltpu.prng_seed/prng_random_bits, which only lower on real TPU (not CPU interpret);
    # eval-mode dropout is the identity, which is what is implemented here.
    x1 = x + attn

    # ---- sublayer 2: x1 + FFN(LayerNorm(x1)) ----
    x1n = _layer_norm(x1, ln2_g_ref[...], ln2_b_ref[...])
    hid = jnp.maximum(
        jnp.dot(x1n, w1_ref[...], preferred_element_type=jnp.float32) + b1_ref[...], 0.0)
    ff = jnp.dot(hid, w2_ref[...], preferred_element_type=jnp.float32) + b2_ref[...]

    o_ref[0] = (x1 + ff).astype(o_ref.dtype)


def transformer_encoder_layer_forward(x, mask, params, *, nhead):
    """x: (B, S, D) float32, mask: (B, 1, S) float32 (1=attend, 0=pad)."""
    B, S, D = x.shape
    F = params["w1"].shape[1]

    def per_batch(shape):        # blocks that walk the batch axis
        nd = len(shape)
        return pl.BlockSpec(shape, lambda b: (b,) + (0,) * (nd - 1))

    def resident(shape):         # weights: same block every step -> stays VMEM-resident
        nd = len(shape)
        return pl.BlockSpec(shape, lambda b: (0,) * nd)

    in_specs = [
        per_batch((1, S, D)),                         # x
        per_batch((1, 1, S)),                         # mask
        resident((1, D)), resident((1, D)),           # ln1 gamma / beta
        resident((D, D)), resident((1, D)),           # Wq, bq
        resident((D, D)), resident((1, D)),           # Wk, bk
        resident((D, D)), resident((1, D)),           # Wv, bv
        resident((D, D)), resident((1, D)),           # Wo, bo
        resident((1, D)), resident((1, D)),           # ln2 gamma / beta
        resident((D, F)), resident((1, F)),           # W1, b1
        resident((F, D)), resident((1, D)),           # W2, b2
    ]

    flops = B * (8 * S * D * D + 4 * S * S * D + 4 * S * D * F)
    transcendentals = B * (nhead * S * S + 2 * S)     # softmax exp + layernorm rsqrt
    bytes_accessed = 4 * (2 * B * S * D + B * S + 4 * D * D + 2 * D * F + 8 * D + F)

    kernel = functools.partial(_encoder_layer_kernel, nhead=nhead)
    return pl.pallas_call(
        kernel,
        out_shape=jax.ShapeDtypeStruct((B, S, D), x.dtype),
        grid_spec=pltpu.PrefetchScalarGridSpec(
            num_scalar_prefetch=0,
            grid=(B,),
            in_specs=in_specs,
            out_specs=per_batch((1, S, D)),
        ),
        compiler_params=pltpu.CompilerParams(
            dimension_semantics=("parallel",),        # batch steps are independent
        ),
        cost_estimate=pl.CostEstimate(
            flops=flops, transcendentals=transcendentals, bytes_accessed=bytes_accessed),
    )(x, mask,
      params["ln1_g"], params["ln1_b"],
      params["wq"], params["bq"], params["wk"], params["bk"],
      params["wv"], params["bv"], params["wo"], params["bo"],
      params["ln2_g"], params["ln2_b"],
      params["w1"], params["b1"], params["w2"], params["b2"])


def _reference_forward(x, mask, p, *, nhead):
    """Pure-JAX mirror of the PyTorch module (eval mode)."""
    B, S, D = x.shape
    hd = D // nhead

    def ln(v, g, b):
        mu = jnp.mean(v, axis=-1, keepdims=True)
        var = jnp.mean((v - mu) ** 2, axis=-1, keepdims=True)
        return (v - mu) * lax.rsqrt(var + _LN_EPS) * g + b

    xn = ln(x, p["ln1_g"][0], p["ln1_b"][0])
    q = xn @ p["wq"] + p["bq"][0]
    k = xn @ p["wk"] + p["bk"][0]
    v = xn @ p["wv"] + p["bv"][0]
    q = q.reshape(B, S, nhead, hd).transpose(0, 2, 1, 3)
    k = k.reshape(B, S, nhead, hd).transpose(0, 2, 1, 3)
    v = v.reshape(B, S, nhead, hd).transpose(0, 2, 1, 3)
    s = jnp.einsum("bhqd,bhkd->bhqk", q, k) / math.sqrt(hd)
    s = jnp.where(mask[:, None, :, :] == 0.0, -1e9, s)
    a = jax.nn.softmax(s, axis=-1)
    ctx = jnp.einsum("bhqk,bhkd->bhqd", a, v)
    ctx = ctx.transpose(0, 2, 1, 3).reshape(B, S, D)
    x1 = x + (ctx @ p["wo"] + p["bo"][0])
    x1n = ln(x1, p["ln2_g"][0], p["ln2_b"][0])
    ff = jnp.maximum(x1n @ p["w1"] + p["b1"][0], 0.0) @ p["w2"] + p["b2"][0]
    return x1 + ff


if __name__ == "__main__":
    B, S, D, H, F = 2, 8, 32, 4, 64      # batch, seq, d_model, nhead, d_ffn

    key = jax.random.PRNGKey(0)
    ks = jax.random.split(key, 16)
    wscale = 0.1

    x = jax.random.normal(ks[0], (B, S, D), dtype=jnp.float32)
    # padding mask: last two key positions of batch element 1 are padding
    mask = jnp.ones((B, 1, S), dtype=jnp.float32).at[1, 0, S - 2:].set(0.0)

    def w(k, shape):
        return wscale * jax.random.normal(k, shape, dtype=jnp.float32)

    params = dict(
        ln1_g=jnp.ones((1, D), jnp.float32), ln1_b=jnp.zeros((1, D), jnp.float32),
        wq=w(ks[1], (D, D)), bq=w(ks[2], (1, D)),
        wk=w(ks[3], (D, D)), bk=w(ks[4], (1, D)),
        wv=w(ks[5], (D, D)), bv=w(ks[6], (1, D)),
        wo=w(ks[7], (D, D)), bo=w(ks[8], (1, D)),
        ln2_g=jnp.ones((1, D), jnp.float32), ln2_b=jnp.zeros((1, D), jnp.float32),
        w1=w(ks[9], (D, F)), b1=w(ks[10], (1, F)),
        w2=w(ks[11], (F, D)), b2=w(ks[12], (1, D)),
    )

    out = transformer_encoder_layer_forward(x, mask, params, nhead=H)
    out = jax.block_until_ready(out)
    ref = _reference_forward(x, mask, params, nhead=H)

    assert out.shape == (B, S, D)
    assert bool(jnp.all(jnp.isfinite(out)))
    assert jnp.allclose(out, ref, atol=1e-2, rtol=1e-2), float(jnp.max(jnp.abs(out - ref)))
    print("KERNEL_OK")
</pallas_src>

<mosaic_0001>
module attributes {stable_mosaic.version = 11 : i64} {
  func.func @_encoder_layer_kernel(%arg0: i32, %arg1: memref<1x8x32xf32, #tpu.memory_space<vmem>>, %arg2: memref<1x1x8xf32, #tpu.memory_space<vmem>>, %arg3: memref<1x32xf32, #tpu.memory_space<vmem>>, %arg4: memref<1x32xf32, #tpu.memory_space<vmem>>, %arg5: memref<32x32xf32, #tpu.memory_space<vmem>>, %arg6: memref<1x32xf32, #tpu.memory_space<vmem>>, %arg7: memref<32x32xf32, #tpu.memory_space<vmem>>, %arg8: memref<1x32xf32, #tpu.memory_space<vmem>>, %arg9: memref<32x32xf32, #tpu.memory_space<vmem>>, %arg10: memref<1x32xf32, #tpu.memory_space<vmem>>, %arg11: memref<32x32xf32, #tpu.memory_space<vmem>>, %arg12: memref<1x32xf32, #tpu.memory_space<vmem>>, %arg13: memref<1x32xf32, #tpu.memory_space<vmem>>, %arg14: memref<1x32xf32, #tpu.memory_space<vmem>>, %arg15: memref<32x64xf32, #tpu.memory_space<vmem>>, %arg16: memref<1x64xf32, #tpu.memory_space<vmem>>, %arg17: memref<64x32xf32, #tpu.memory_space<vmem>>, %arg18: memref<1x32xf32, #tpu.memory_space<vmem>>, %arg19: memref<1x8x32xf32, #tpu.memory_space<vmem>>) attributes {dimension_semantics = [#tpu.dimension_semantics<parallel>], iteration_bounds = array<i64: 2>, scalar_prefetch = 0 : i64, scratch_operands = 0 : i64, tpu.core_type = #tpu.core_type<tc>, window_params = [{transform_indices = @transform_0, window_bounds = array<i64: 1, 8, 32>}, {transform_indices = @transform_1, window_bounds = array<i64: 1, 1, 8>}, {pipeline_mode = #tpu.pipeline_mode<synchronous>, transform_indices = @transform_2, window_bounds = array<i64: 1, 32>}, {pipeline_mode = #tpu.pipeline_mode<synchronous>, transform_indices = @transform_3, window_bounds = array<i64: 1, 32>}, {pipeline_mode = #tpu.pipeline_mode<synchronous>, transform_indices = @transform_4, window_bounds = array<i64: 32, 32>}, {pipeline_mode = #tpu.pipeline_mode<synchronous>, transform_indices = @transform_5, window_bounds = array<i64: 1, 32>}, {pipeline_mode = #tpu.pipeline_mode<synchronous>, transform_indices = @transform_6, window_bounds = array<i64: 32, 32>}, {pipeline_mode = #tpu.pipeline_mode<synchronous>, transform_indices = @transform_7, window_bounds = array<i64: 1, 32>}, {pipeline_mode = #tpu.pipeline_mode<synchronous>, transform_indices = @transform_8, window_bounds = array<i64: 32, 32>}, {pipeline_mode = #tpu.pipeline_mode<synchronous>, transform_indices = @transform_9, window_bounds = array<i64: 1, 32>}, {pipeline_mode = #tpu.pipeline_mode<synchronous>, transform_indices = @transform_10, window_bounds = array<i64: 32, 32>}, {pipeline_mode = #tpu.pipeline_mode<synchronous>, transform_indices = @transform_11, window_bounds = array<i64: 1, 32>}, {pipeline_mode = #tpu.pipeline_mode<synchronous>, transform_indices = @transform_12, window_bounds = array<i64: 1, 32>}, {pipeline_mode = #tpu.pipeline_mode<synchronous>, transform_indices = @transform_13, window_bounds = array<i64: 1, 32>}, {pipeline_mode = #tpu.pipeline_mode<synchronous>, transform_indices = @transform_14, window_bounds = array<i64: 32, 64>}, {pipeline_mode = #tpu.pipeline_mode<synchronous>, transform_indices = @transform_15, window_bounds = array<i64: 1, 64>}, {pipeline_mode = #tpu.pipeline_mode<synchronous>, transform_indices = @transform_16, window_bounds = array<i64: 64, 32>}, {pipeline_mode = #tpu.pipeline_mode<synchronous>, transform_indices = @transform_17, window_bounds = array<i64: 1, 32>}, {transform_indices = @transform_18, window_bounds = array<i64: 1, 8, 32>}]} {
    %c0 = arith.constant 0 : index
    %c0_0 = arith.constant 0 : index
    %c0_1 = arith.constant 0 : index
    %0 = vector.load %arg1[%c0, %c0_0, %c0_1] : memref<1x8x32xf32, #tpu.memory_space<vmem>>, vector<1x8x32xf32>
    %1 = vector.shape_cast %0 : vector<1x8x32xf32> to vector<8x32xf32>
    %c0_2 = arith.constant 0 : index
    %c0_3 = arith.constant 0 : index
    %2 = vector.load %arg3[%c0_2, %c0_3] : memref<1x32xf32, #tpu.memory_space<vmem>>, vector<1x32xf32>
    %c0_4 = arith.constant 0 : index
    %c0_5 = arith.constant 0 : index
    %3 = vector.load %arg4[%c0_4, %c0_5] : memref<1x32xf32, #tpu.memory_space<vmem>>, vector<1x32xf32>
    %cst = arith.constant dense<0.000000e+00> : vector<8xf32>
    %4 = vector.multi_reduction <add>, %1, %cst [1] : vector<8x32xf32> to vector<8xf32>
    %5 = vector.shape_cast %4 : vector<8xf32> to vector<8x1xf32>
    %cst_6 = arith.constant 3.200000e+01 : f32
    %6 = vector.broadcast %cst_6 : f32 to vector<8x1xf32>
    %7 = arith.divf %5, %6 : vector<8x1xf32>
    %8 = vector.broadcast %7 : vector<8x1xf32> to vector<8x32xf32>
    %9 = arith.subf %1, %8 : vector<8x32xf32>
    %10 = vector.broadcast %7 : vector<8x1xf32> to vector<8x32xf32>
    %11 = arith.subf %1, %10 : vector<8x32xf32>
    %12 = arith.mulf %9, %11 : vector<8x32xf32>
    %cst_7 = arith.constant dense<0.000000e+00> : vector<8xf32>
    %13 = vector.multi_reduction <add>, %12, %cst_7 [1] : vector<8x32xf32> to vector<8xf32>
    %14 = vector.shape_cast %13 : vector<8xf32> to vector<8x1xf32>
    %cst_8 = arith.constant 3.200000e+01 : f32
    %15 = vector.broadcast %cst_8 : f32 to vector<8x1xf32>
    %16 = arith.divf %14, %15 : vector<8x1xf32>
    %17 = vector.broadcast %7 : vector<8x1xf32> to vector<8x32xf32>
    %18 = arith.subf %1, %17 : vector<8x32xf32>
    %cst_9 = arith.constant 9.99999974E-6 : f32
    %19 = vector.broadcast %cst_9 : f32 to vector<8x1xf32>
    %20 = arith.addf %16, %19 : vector<8x1xf32>
    %21 = math.rsqrt %20 : vector<8x1xf32>
    %22 = vector.broadcast %21 : vector<8x1xf32> to vector<8x32xf32>
    %23 = arith.mulf %18, %22 : vector<8x32xf32>
    %24 = vector.broadcast %2 : vector<1x32xf32> to vector<8x32xf32>
    %25 = arith.mulf %23, %24 : vector<8x32xf32>
    %26 = vector.broadcast %3 : vector<1x32xf32> to vector<8x32xf32>
    %27 = arith.addf %25, %26 : vector<8x32xf32>
    %c0_10 = arith.constant 0 : index
    %c0_11 = arith.constant 0 : index
    %28 = vector.load %arg5[%c0_10, %c0_11] : memref<32x32xf32, #tpu.memory_space<vmem>>, vector<32x32xf32>
    %cst_12 = arith.constant dense<0.000000e+00> : vector<8x32xf32>
    %29 = tpu.matmul %27, %28, %cst_12 {dimension_numbers = #tpu.dot_dimension_numbers<[1], [0], [0], [1], [0, 0, 1, 1], [], []>} : vector<8x32xf32>, vector<32x32xf32>, vector<8x32xf32> -> vector<8x32xf32>
    %c0_13 = arith.constant 0 : index
    %c0_14 = arith.constant 0 : index
    %30 = vector.load %arg6[%c0_13, %c0_14] : memref<1x32xf32, #tpu.memory_space<vmem>>, vector<1x32xf32>
    %31 = vector.broadcast %30 : vector<1x32xf32> to vector<8x32xf32>
    %32 = arith.addf %29, %31 : vector<8x32xf32>
    %c0_15 = arith.constant 0 : index
    %c0_16 = arith.constant 0 : index
    %33 = vector.load %arg7[%c0_15, %c0_16] : memref<32x32xf32, #tpu.memory_space<vmem>>, vector<32x32xf32>
    %cst_17 = arith.constant dense<0.000000e+00> : vector<8x32xf32>
    %34 = tpu.matmul %27, %33, %cst_17 {dimension_numbers = #tpu.dot_dimension_numbers<[1], [0], [0], [1], [0, 0, 1, 1], [], []>} : vector<8x32xf32>, vector<32x32xf32>, vector<8x32xf32> -> vector<8x32xf32>
    %c0_18 = arith.constant 0 : index
    %c0_19 = arith.constant 0 : index
    %35 = vector.load %arg8[%c0_18, %c0_19] : memref<1x32xf32, #tpu.memory_space<vmem>>, vector<1x32xf32>
    %36 = vector.broadcast %35 : vector<1x32xf32> to vector<8x32xf32>
    %37 = arith.addf %34, %36 : vector<8x32xf32>
    %c0_20 = arith.constant 0 : index
    %c0_21 = arith.constant 0 : index
    %38 = vector.load %arg9[%c0_20, %c0_21] : memref<32x32xf32, #tpu.memory_space<vmem>>, vector<32x32xf32>
    %cst_22 = arith.constant dense<0.000000e+00> : vector<8x32xf32>
    %39 = tpu.matmul %27, %38, %cst_22 {dimension_numbers = #tpu.dot_dimension_numbers<[1], [0], [0], [1], [0, 0, 1, 1], [], []>} : vector<8x32xf32>, vector<32x32xf32>, vector<8x32xf32> -> vector<8x32xf32>
    %c0_23 = arith.constant 0 : index
    %c0_24 = arith.constant 0 : index
    %40 = vector.load %arg10[%c0_23, %c0_24] : memref<1x32xf32, #tpu.memory_space<vmem>>, vector<1x32xf32>
    %41 = vector.broadcast %40 : vector<1x32xf32> to vector<8x32xf32>
    %42 = arith.addf %39, %41 : vector<8x32xf32>
    %c0_25 = arith.constant 0 : index
    %c0_26 = arith.constant 0 : index
    %c0_27 = arith.constant 0 : index
    %43 = vector.load %arg2[%c0_25, %c0_26, %c0_27] : memref<1x1x8xf32, #tpu.memory_space<vmem>>, vector<1x1x8xf32>
    %44 = vector.shape_cast %43 : vector<1x1x8xf32> to vector<1x8xf32>
    %45 = vector.extract_strided_slice %32 {offsets = [0, 0], sizes = [8, 8], strides = [1, 1]} : vector<8x32xf32> to vector<8x8xf32>
    %46 = vector.extract_strided_slice %37 {offsets = [0, 0], sizes = [8, 8], strides = [1, 1]} : vector<8x32xf32> to vector<8x8xf32>
    %47 = vector.extract_strided_slice %42 {offsets = [0, 0], sizes = [8, 8], strides = [1, 1]} : vector<8x32xf32> to vector<8x8xf32>
    %48 = tpu.transpose %46, [1, 0] : vector<8x8xf32> -> vector<8x8xf32>
    %cst_28 = arith.constant dense<0.000000e+00> : vector<8x8xf32>
    %49 = tpu.matmul %45, %48, %cst_28 {dimension_numbers = #tpu.dot_dimension_numbers<[1], [0], [0], [1], [0, 0, 1, 1], [], []>} : vector<8x8xf32>, vector<8x8xf32>, vector<8x8xf32> -> vector<8x8xf32>
    %cst_29 = arith.constant 0.353553385 : f32
    %50 = vector.broadcast %cst_29 : f32 to vector<8x8xf32>
    %51 = arith.mulf %49, %50 : vector<8x8xf32>
    %cst_30 = arith.constant 0.000000e+00 : f32
    %52 = vector.broadcast %cst_30 : f32 to vector<1x8xf32>
    %53 = arith.cmpf oeq, %44, %52 : vector<1x8xf32>
    %cst_31 = arith.constant -1.000000e+09 : f32
    %54 = vector.shape_cast %53 : vector<1x8xi1> to vector<1x8xi1>
    %55 = vector.broadcast %54 : vector<1x8xi1> to vector<8x8xi1>
    %56 = vector.broadcast %cst_31 : f32 to vector<8x8xf32>
    %57 = arith.select %55, %56, %51 : vector<8x8xi1>, vector<8x8xf32>
    %cst_32 = arith.constant dense<0xFF800000> : vector<8xf32>
    %58 = vector.multi_reduction <maximumf>, %57, %cst_32 [1] : vector<8x8xf32> to vector<8xf32>
    %59 = vector.shape_cast %58 : vector<8xf32> to vector<8x1xf32>
    %60 = vector.broadcast %59 : vector<8x1xf32> to vector<8x8xf32>
    %61 = arith.subf %57, %60 : vector<8x8xf32>
    %62 = math.exp %61 : vector<8x8xf32>
    %cst_33 = arith.constant dense<0.000000e+00> : vector<8xf32>
    %63 = vector.multi_reduction <add>, %62, %cst_33 [1] : vector<8x8xf32> to vector<8xf32>
    %64 = vector.shape_cast %63 : vector<8xf32> to vector<8x1xf32>
    %65 = vector.broadcast %64 : vector<8x1xf32> to vector<8x8xf32>
    %66 = arith.divf %62, %65 : vector<8x8xf32>
    %cst_34 = arith.constant dense<0.000000e+00> : vector<8x8xf32>
    %67 = tpu.matmul %66, %47, %cst_34 {dimension_numbers = #tpu.dot_dimension_numbers<[1], [0], [0], [1], [0, 0, 1, 1], [], []>} : vector<8x8xf32>, vector<8x8xf32>, vector<8x8xf32> -> vector<8x8xf32>
    %68 = vector.extract_strided_slice %32 {offsets = [0, 8], sizes = [8, 8], strides = [1, 1]} : vector<8x32xf32> to vector<8x8xf32>
    %69 = vector.extract_strided_slice %37 {offsets = [0, 8], sizes = [8, 8], strides = [1, 1]} : vector<8x32xf32> to vector<8x8xf32>
    %70 = vector.extract_strided_slice %42 {offsets = [0, 8], sizes = [8, 8], strides = [1, 1]} : vector<8x32xf32> to vector<8x8xf32>
    %71 = tpu.transpose %69, [1, 0] : vector<8x8xf32> -> vector<8x8xf32>
    %cst_35 = arith.constant dense<0.000000e+00> : vector<8x8xf32>
    %72 = tpu.matmul %68, %71, %cst_35 {dimension_numbers = #tpu.dot_dimension_numbers<[1], [0], [0], [1], [0, 0, 1, 1], [], []>} : vector<8x8xf32>, vector<8x8xf32>, vector<8x8xf32> -> vector<8x8xf32>
    %cst_36 = arith.constant 0.353553385 : f32
    %73 = vector.broadcast %cst_36 : f32 to vector<8x8xf32>
    %74 = arith.mulf %72, %73 : vector<8x8xf32>
    %cst_37 = arith.constant 0.000000e+00 : f32
    %75 = vector.broadcast %cst_37 : f32 to vector<1x8xf32>
    %76 = arith.cmpf oeq, %44, %75 : vector<1x8xf32>
    %cst_38 = arith.constant -1.000000e+09 : f32
    %77 = vector.shape_cast %76 : vector<1x8xi1> to vector<1x8xi1>
    %78 = vector.broadcast %77 : vector<1x8xi1> to vector<8x8xi1>
    %79 = vector.broadcast %cst_38 : f32 to vector<8x8xf32>
    %80 = arith.select %78, %79, %74 : vector<8x8xi1>, vector<8x8xf32>
    %cst_39 = arith.constant dense<0xFF800000> : vector<8xf32>
    %81 = vector.multi_reduction <maximumf>, %80, %cst_39 [1] : vector<8x8xf32> to vector<8xf32>
    %82 = vector.shape_cast %81 : vector<8xf32> to vector<8x1xf32>
    %83 = vector.broadcast %82 : vector<8x1xf32> to vector<8x8xf32>
    %84 = arith.subf %80, %83 : vector<8x8xf32>
    %85 = math.exp %84 : vector<8x8xf32>
    %cst_40 = arith.constant dense<0.000000e+00> : vector<8xf32>
    %86 = vector.multi_reduction <add>, %85, %cst_40 [1] : vector<8x8xf32> to vector<8xf32>
    %87 = vector.shape_cast %86 : vector<8xf32> to vector<8x1xf32>
    %88 = vector.broadcast %87 : vector<8x1xf32> to vector<8x8xf32>
    %89 = arith.divf %85, %88 : vector<8x8xf32>
    %cst_41 = arith.constant dense<0.000000e+00> : vector<8x8xf32>
    %90 = tpu.matmul %89, %70, %cst_41 {dimension_numbers = #tpu.dot_dimension_numbers<[1], [0], [0], [1], [0, 0, 1, 1], [], []>} : vector<8x8xf32>, vector<8x8xf32>, vector<8x8xf32> -> vector<8x8xf32>
    %91 = vector.extract_strided_slice %32 {offsets = [0, 16], sizes = [8, 8], strides = [1, 1]} : vector<8x32xf32> to vector<8x8xf32>
    %92 = vector.extract_strided_slice %37 {offsets = [0, 16], sizes = [8, 8], strides = [1, 1]} : vector<8x32xf32> to vector<8x8xf32>
    %93 = vector.extract_strided_slice %42 {offsets = [0, 16], sizes = [8, 8], strides = [1, 1]} : vector<8x32xf32> to vector<8x8xf32>
    %94 = tpu.transpose %92, [1, 0] : vector<8x8xf32> -> vector<8x8xf32>
    %cst_42 = arith.constant dense<0.000000e+00> : vector<8x8xf32>
    %95 = tpu.matmul %91, %94, %cst_42 {dimension_numbers = #tpu.dot_dimension_numbers<[1], [0], [0], [1], [0, 0, 1, 1], [], []>} : vector<8x8xf32>, vector<8x8xf32>, vector<8x8xf32> -> vector<8x8xf32>
    %cst_43 = arith.constant 0.353553385 : f32
    %96 = vector.broadcast %cst_43 : f32 to vector<8x8xf32>
    %97 = arith.mulf %95, %96 : vector<8x8xf32>
    %cst_44 = arith.constant 0.000000e+00 : f32
    %98 = vector.broadcast %cst_44 : f32 to vector<1x8xf32>
    %99 = arith.cmpf oeq, %44, %98 : vector<1x8xf32>
    %cst_45 = arith.constant -1.000000e+09 : f32
    %100 = vector.shape_cast %99 : vector<1x8xi1> to vector<1x8xi1>
    %101 = vector.broadcast %100 : vector<1x8xi1> to vector<8x8xi1>
    %102 = vector.broadcast %cst_45 : f32 to vector<8x8xf32>
    %103 = arith.select %101, %102, %97 : vector<8x8xi1>, vector<8x8xf32>
    %cst_46 = arith.constant dense<0xFF800000> : vector<8xf32>
    %104 = vector.multi_reduction <maximumf>, %103, %cst_46 [1] : vector<8x8xf32> to vector<8xf32>
    %105 = vector.shape_cast %104 : vector<8xf32> to vector<8x1xf32>
    %106 = vector.broadcast %105 : vector<8x1xf32> to vector<8x8xf32>
    %107 = arith.subf %103, %106 : vector<8x8xf32>
    %108 = math.exp %107 : vector<8x8xf32>
    %cst_47 = arith.constant dense<0.000000e+00> : vector<8xf32>
    %109 = vector.multi_reduction <add>, %108, %cst_47 [1] : vector<8x8xf32> to vector<8xf32>
    %110 = vector.shape_cast %109 : vector<8xf32> to vector<8x1xf32>
    %111 = vector.broadcast %110 : vector<8x1xf32> to vector<8x8xf32>
    %112 = arith.divf %108, %111 : vector<8x8xf32>
    %cst_48 = arith.constant dense<0.000000e+00> : vector<8x8xf32>
    %113 = tpu.matmul %112, %93, %cst_48 {dimension_numbers = #tpu.dot_dimension_numbers<[1], [0], [0], [1], [0, 0, 1, 1], [], []>} : vector<8x8xf32>, vector<8x8xf32>, vector<8x8xf32> -> vector<8x8xf32>
    %114 = vector.extract_strided_slice %32 {offsets = [0, 24], sizes = [8, 8], strides = [1, 1]} : vector<8x32xf32> to vector<8x8xf32>
    %115 = vector.extract_strided_slice %37 {offsets = [0, 24], sizes = [8, 8], strides = [1, 1]} : vector<8x32xf32> to vector<8x8xf32>
    %116 = vector.extract_strided_slice %42 {offsets = [0, 24], sizes = [8, 8], strides = [1, 1]} : vector<8x32xf32> to vector<8x8xf32>
    %117 = tpu.transpose %115, [1, 0] : vector<8x8xf32> -> vector<8x8xf32>
    %cst_49 = arith.constant dense<0.000000e+00> : vector<8x8xf32>
    %118 = tpu.matmul %114, %117, %cst_49 {dimension_numbers = #tpu.dot_dimension_numbers<[1], [0], [0], [1], [0, 0, 1, 1], [], []>} : vector<8x8xf32>, vector<8x8xf32>, vector<8x8xf32> -> vector<8x8xf32>
    %cst_50 = arith.constant 0.353553385 : f32
    %119 = vector.broadcast %cst_50 : f32 to vector<8x8xf32>
    %120 = arith.mulf %118, %119 : vector<8x8xf32>
    %cst_51 = arith.constant 0.000000e+00 : f32
    %121 = vector.broadcast %cst_51 : f32 to vector<1x8xf32>
    %122 = arith.cmpf oeq, %44, %121 : vector<1x8xf32>
    %cst_52 = arith.constant -1.000000e+09 : f32
    %123 = vector.shape_cast %122 : vector<1x8xi1> to vector<1x8xi1>
    %124 = vector.broadcast %123 : vector<1x8xi1> to vector<8x8xi1>
    %125 = vector.broadcast %cst_52 : f32 to vector<8x8xf32>
    %126 = arith.select %124, %125, %120 : vector<8x8xi1>, vector<8x8xf32>
    %cst_53 = arith.constant dense<0xFF800000> : vector<8xf32>
    %127 = vector.multi_reduction <maximumf>, %126, %cst_53 [1] : vector<8x8xf32> to vector<8xf32>
    %128 = vector.shape_cast %127 : vector<8xf32> to vector<8x1xf32>
    %129 = vector.broadcast %128 : vector<8x1xf32> to vector<8x8xf32>
    %130 = arith.subf %126, %129 : vector<8x8xf32>
    %131 = math.exp %130 : vector<8x8xf32>
    %cst_54 = arith.constant dense<0.000000e+00> : vector<8xf32>
    %132 = vector.multi_reduction <add>, %131, %cst_54 [1] : vector<8x8xf32> to vector<8xf32>
    %133 = vector.shape_cast %132 : vector<8xf32> to vector<8x1xf32>
    %134 = vector.broadcast %133 : vector<8x1xf32> to vector<8x8xf32>
    %135 = arith.divf %131, %134 : vector<8x8xf32>
    %cst_55 = arith.constant dense<0.000000e+00> : vector<8x8xf32>
    %136 = tpu.matmul %135, %116, %cst_55 {dimension_numbers = #tpu.dot_dimension_numbers<[1], [0], [0], [1], [0, 0, 1, 1], [], []>} : vector<8x8xf32>, vector<8x8xf32>, vector<8x8xf32> -> vector<8x8xf32>
    %137 = tpu.concatenate %67, %90, %113, %136 in 1 : vector<8x8xf32>, vector<8x8xf32>, vector<8x8xf32>, vector<8x8xf32> -> vector<8x32xf32>
    %c0_56 = arith.constant 0 : index
    %c0_57 = arith.constant 0 : index
    %138 = vector.load %arg11[%c0_56, %c0_57] : memref<32x32xf32, #tpu.memory_space<vmem>>, vector<32x32xf32>
    %cst_58 = arith.constant dense<0.000000e+00> : vector<8x32xf32>
    %139 = tpu.matmul %137, %138, %cst_58 {dimension_numbers = #tpu.dot_dimension_numbers<[1], [0], [0], [1], [0, 0, 1, 1], [], []>} : vector<8x32xf32>, vector<32x32xf32>, vector<8x32xf32> -> vector<8x32xf32>
    %c0_59 = arith.constant 0 : index
    %c0_60 = arith.constant 0 : index
    %140 = vector.load %arg12[%c0_59, %c0_60] : memref<1x32xf32, #tpu.memory_space<vmem>>, vector<1x32xf32>
    %141 = vector.broadcast %140 : vector<1x32xf32> to vector<8x32xf32>
    %142 = arith.addf %139, %141 : vector<8x32xf32>
    %143 = arith.addf %1, %142 : vector<8x32xf32>
    %c0_61 = arith.constant 0 : index
    %c0_62 = arith.constant 0 : index
    %144 = vector.load %arg13[%c0_61, %c0_62] : memref<1x32xf32, #tpu.memory_space<vmem>>, vector<1x32xf32>
    %c0_63 = arith.constant 0 : index
    %c0_64 = arith.constant 0 : index
    %145 = vector.load %arg14[%c0_63, %c0_64] : memref<1x32xf32, #tpu.memory_space<vmem>>, vector<1x32xf32>
    %cst_65 = arith.constant dense<0.000000e+00> : vector<8xf32>
    %146 = vector.multi_reduction <add>, %143, %cst_65 [1] : vector<8x32xf32> to vector<8xf32>
    %147 = vector.shape_cast %146 : vector<8xf32> to vector<8x1xf32>
    %cst_66 = arith.constant 3.200000e+01 : f32
    %148 = vector.broadcast %cst_66 : f32 to vector<8x1xf32>
    %149 = arith.divf %147, %148 : vector<8x1xf32>
    %150 = vector.broadcast %149 : vector<8x1xf32> to vector<8x32xf32>
    %151 = arith.subf %143, %150 : vector<8x32xf32>
    %152 = vector.broadcast %149 : vector<8x1xf32> to vector<8x32xf32>
    %153 = arith.subf %143, %152 : vector<8x32xf32>
    %154 = arith.mulf %151, %153 : vector<8x32xf32>
    %cst_67 = arith.constant dense<0.000000e+00> : vector<8xf32>
    %155 = vector.multi_reduction <add>, %154, %cst_67 [1] : vector<8x32xf32> to vector<8xf32>
    %156 = vector.shape_cast %155 : vector<8xf32> to vector<8x1xf32>
    %cst_68 = arith.constant 3.200000e+01 : f32
    %157 = vector.broadcast %cst_68 : f32 to vector<8x1xf32>
    %158 = arith.divf %156, %157 : vector<8x1xf32>
    %159 = vector.broadcast %149 : vector<8x1xf32> to vector<8x32xf32>
    %160 = arith.subf %143, %159 : vector<8x32xf32>
    %cst_69 = arith.constant 9.99999974E-6 : f32
    %161 = vector.broadcast %cst_69 : f32 to vector<8x1xf32>
    %162 = arith.addf %158, %161 : vector<8x1xf32>
    %163 = math.rsqrt %162 : vector<8x1xf32>
    %164 = vector.broadcast %163 : vector<8x1xf32> to vector<8x32xf32>
    %165 = arith.mulf %160, %164 : vector<8x32xf32>
    %166 = vector.broadcast %144 : vector<1x32xf32> to vector<8x32xf32>
    %167 = arith.mulf %165, %166 : vector<8x32xf32>
    %168 = vector.broadcast %145 : vector<1x32xf32> to vector<8x32xf32>
    %169 = arith.addf %167, %168 : vector<8x32xf32>
    %c0_70 = arith.constant 0 : index
    %c0_71 = arith.constant 0 : index
    %170 = vector.load %arg15[%c0_70, %c0_71] : memref<32x64xf32, #tpu.memory_space<vmem>>, vector<32x64xf32>
    %cst_72 = arith.constant dense<0.000000e+00> : vector<8x64xf32>
    %171 = tpu.matmul %169, %170, %cst_72 {dimension_numbers = #tpu.dot_dimension_numbers<[1], [0], [0], [1], [0, 0, 1, 1], [], []>} : vector<8x32xf32>, vector<32x64xf32>, vector<8x64xf32> -> vector<8x64xf32>
    %c0_73 = arith.constant 0 : index
    %c0_74 = arith.constant 0 : index
    %172 = vector.load %arg16[%c0_73, %c0_74] : memref<1x64xf32, #tpu.memory_space<vmem>>, vector<1x64xf32>
    %173 = vector.broadcast %172 : vector<1x64xf32> to vector<8x64xf32>
    %174 = arith.addf %171, %173 : vector<8x64xf32>
    %cst_75 = arith.constant 0.000000e+00 : f32
    %175 = vector.broadcast %cst_75 : f32 to vector<8x64xf32>
    %176 = arith.maximumf %174, %175 : vector<8x64xf32>
    %c0_76 = arith.constant 0 : index
    %c0_77 = arith.constant 0 : index
    %177 = vector.load %arg17[%c0_76, %c0_77] : memref<64x32xf32, #tpu.memory_space<vmem>>, vector<64x32xf32>
    %cst_78 = arith.constant dense<0.000000e+00> : vector<8x32xf32>
    %178 = tpu.matmul %176, %177, %cst_78 {dimension_numbers = #tpu.dot_dimension_numbers<[1], [0], [0], [1], [0, 0, 1, 1], [], []>} : vector<8x64xf32>, vector<64x32xf32>, vector<8x32xf32> -> vector<8x32xf32>
    %c0_79 = arith.constant 0 : index
    %c0_80 = arith.constant 0 : index
    %179 = vector.load %arg18[%c0_79, %c0_80] : memref<1x32xf32, #tpu.memory_space<vmem>>, vector<1x32xf32>
    %180 = vector.broadcast %179 : vector<1x32xf32> to vector<8x32xf32>
    %181 = arith.addf %178, %180 : vector<8x32xf32>
    %182 = arith.addf %143, %181 : vector<8x32xf32>
    %c0_81 = arith.constant 0 : index
    %c0_82 = arith.constant 0 : index
    %c0_83 = arith.constant 0 : index
    %183 = vector.load %arg19[%c0_81, %c0_82, %c0_83] : memref<1x8x32xf32, #tpu.memory_space<vmem>>, vector<1x8x32xf32>
    %184 = vector.shape_cast %183 : vector<1x8x32xf32> to vector<8x32xf32>
    %185 = vector.shape_cast %182 : vector<8x32xf32> to vector<1x8x32xf32>
    tpu.vector_store %arg19[%c0_81, %c0_82, %c0_83], %185 {strides = array<i32>} : memref<1x8x32xf32, #tpu.memory_space<vmem>>, vector<1x8x32xf32>,
    return
  }
  func.func @transform_0(%arg0: i32) -> (i32, i32, i32) {
    %c0_i32 = arith.constant 0 : i32
    %c0_i32_0 = arith.constant 0 : i32
    %c0_i32_1 = arith.constant 0 : i32
    return %arg0, %c0_i32, %c0_i32_0 : i32, i32, i32
  }
  func.func @transform_1(%arg0: i32) -> (i32, i32, i32) {
    %c0_i32 = arith.constant 0 : i32
    %c0_i32_0 = arith.constant 0 : i32
    %c0_i32_1 = arith.constant 0 : i32
    return %arg0, %c0_i32, %c0_i32_0 : i32, i32, i32
  }
  func.func @transform_2(%arg0: i32) -> (i32, i32) {
    %c0_i32 = arith.constant 0 : i32
    %c0_i32_0 = arith.constant 0 : i32
    %c0_i32_1 = arith.constant 0 : i32
    return %c0_i32, %c0_i32_0 : i32, i32
  }
  func.func @transform_3(%arg0: i32) -> (i32, i32) {
    %c0_i32 = arith.constant 0 : i32
    %c0_i32_0 = arith.constant 0 : i32
    %c0_i32_1 = arith.constant 0 : i32
    return %c0_i32, %c0_i32_0 : i32, i32
  }
  func.func @transform_4(%arg0: i32) -> (i32, i32) {
    %c0_i32 = arith.constant 0 : i32
    %c0_i32_0 = arith.constant 0 : i32
    %c0_i32_1 = arith.constant 0 : i32
    return %c0_i32, %c0_i32_0 : i32, i32
  }
  func.func @transform_5(%arg0: i32) -> (i32, i32) {
    %c0_i32 = arith.constant 0 : i32
    %c0_i32_0 = arith.constant 0 : i32
    %c0_i32_1 = arith.constant 0 : i32
    return %c0_i32, %c0_i32_0 : i32, i32
  }
  func.func @transform_6(%arg0: i32) -> (i32, i32) {
    %c0_i32 = arith.constant 0 : i32
    %c0_i32_0 = arith.constant 0 : i32
    %c0_i32_1 = arith.constant 0 : i32
    return %c0_i32, %c0_i32_0 : i32, i32
  }
  func.func @transform_7(%arg0: i32) -> (i32, i32) {
    %c0_i32 = arith.constant 0 : i32
    %c0_i32_0 = arith.constant 0 : i32
    %c0_i32_1 = arith.constant 0 : i32
    return %c0_i32, %c0_i32_0 : i32, i32
  }
  func.func @transform_8(%arg0: i32) -> (i32, i32) {
    %c0_i32 = arith.constant 0 : i32
    %c0_i32_0 = arith.constant 0 : i32
    %c0_i32_1 = arith.constant 0 : i32
    return %c0_i32, %c0_i32_0 : i32, i32
  }
  func.func @transform_9(%arg0: i32) -> (i32, i32) {
    %c0_i32 = arith.constant 0 : i32
    %c0_i32_0 = arith.constant 0 : i32
    %c0_i32_1 = arith.constant 0 : i32
    return %c0_i32, %c0_i32_0 : i32, i32
  }
  func.func @transform_10(%arg0: i32) -> (i32, i32) {
    %c0_i32 = arith.constant 0 : i32
    %c0_i32_0 = arith.constant 0 : i32
    %c0_i32_1 = arith.constant 0 : i32
    return %c0_i32, %c0_i32_0 : i32, i32
  }
  func.func @transform_11(%arg0: i32) -> (i32, i32) {
    %c0_i32 = arith.constant 0 : i32
    %c0_i32_0 = arith.constant 0 : i32
    %c0_i32_1 = arith.constant 0 : i32
    return %c0_i32, %c0_i32_0 : i32, i32
  }
  func.func @transform_12(%arg0: i32) -> (i32, i32) {
    %c0_i32 = arith.constant 0 : i32
    %c0_i32_0 = arith.constant 0 : i32
    %c0_i32_1 = arith.constant 0 : i32
    return %c0_i32, %c0_i32_0 : i32, i32
  }
  func.func @transform_13(%arg0: i32) -> (i32, i32) {
    %c0_i32 = arith.constant 0 : i32
    %c0_i32_0 = arith.constant 0 : i32
    %c0_i32_1 = arith.constant 0 : i32
    return %c0_i32, %c0_i32_0 : i32, i32
  }
  func.func @transform_14(%arg0: i32) -> (i32, i32) {
    %c0_i32 = arith.constant 0 : i32
    %c0_i32_0 = arith.constant 0 : i32
    %c0_i32_1 = arith.constant 0 : i32
    return %c0_i32, %c0_i32_0 : i32, i32
  }
  func.func @transform_15(%arg0: i32) -> (i32, i32) {
    %c0_i32 = arith.constant 0 : i32
    %c0_i32_0 = arith.constant 0 : i32
    %c0_i32_1 = arith.constant 0 : i32
    return %c0_i32, %c0_i32_0 : i32, i32
  }
  func.func @transform_16(%arg0: i32) -> (i32, i32) {
    %c0_i32 = arith.constant 0 : i32
    %c0_i32_0 = arith.constant 0 : i32
    %c0_i32_1 = arith.constant 0 : i32
    return %c0_i32, %c0_i32_0 : i32, i32
  }
  func.func @transform_17(%arg0: i32) -> (i32, i32) {
    %c0_i32 = arith.constant 0 : i32
    %c0_i32_0 = arith.constant 0 : i32
    %c0_i32_1 = arith.constant 0 : i32
    return %c0_i32, %c0_i32_0 : i32, i32
  }
  func.func @transform_18(%arg0: i32) -> (i32, i32, i32) {
    %c0_i32 = arith.constant 0 : i32
    %c0_i32_0 = arith.constant 0 : i32
    %c0_i32_1 = arith.constant 0 : i32
    return %arg0, %c0_i32, %c0_i32_0 : i32, i32, i32
  }
}

</mosaic_0001>

<llo_original>
// kernel: tpu_custom_call.1
$region0: #{tpu_custom_call.1}
  #allocation0 [shape = 'u32[]', space=smem, size = 0x4, offset = 0x4, fixed_abs, tag = 'smem constant byte address 0x4 - core index']
  #allocation1 [shape = 'u32[144,128]{1,0:T(1,128)}', space=vmem, size = 0x12000, scoped, tag = 'internal scratch']
  %s0 = inlined_call_operand.hbm [shape: f32[2,8,32], index: 0, kind: input, shape index: {}]
  %s1 = inlined_call_operand.vmem [shape: f32[2,1,8], index: 1, kind: input, shape index: {}]
  %s2 = inlined_call_operand.vmem [shape: f32[1,32], index: 2, kind: input, shape index: {}]
  %s3 = inlined_call_operand.vmem [shape: f32[1,32], index: 3, kind: input, shape index: {}]
  %s4 = inlined_call_operand.vmem [shape: f32[32,32], index: 4, kind: input, shape index: {}]
  %s5 = inlined_call_operand.vmem [shape: f32[1,32], index: 5, kind: input, shape index: {}]
  %s6 = inlined_call_operand.vmem [shape: f32[32,32], index: 6, kind: input, shape index: {}]
  %s7 = inlined_call_operand.vmem [shape: f32[1,32], index: 7, kind: input, shape index: {}]
  %s8 = inlined_call_operand.vmem [shape: f32[32,32], index: 8, kind: input, shape index: {}]
  %s9 = inlined_call_operand.vmem [shape: f32[1,32], index: 9, kind: input, shape index: {}]
  %s10 = inlined_call_operand.hbm [shape: f32[32,32], index: 10, kind: input, shape index: {}]
  %s11 = inlined_call_operand.vmem [shape: f32[1,32], index: 11, kind: input, shape index: {}]
  %s12 = inlined_call_operand.vmem [shape: f32[1,32], index: 12, kind: input, shape index: {}]
  %s13 = inlined_call_operand.vmem [shape: f32[1,32], index: 13, kind: input, shape index: {}]
  %s14 = inlined_call_operand.hbm [shape: f32[32,64], index: 14, kind: input, shape index: {}]
  %s15 = inlined_call_operand.vmem [shape: f32[1,64], index: 15, kind: input, shape index: {}]
  %s16 = inlined_call_operand.vmem [shape: f32[64,32], index: 16, kind: input, shape index: {}]
  %s17 = inlined_call_operand.vmem [shape: f32[1,32], index: 17, kind: input, shape index: {}]
  %s18 = inlined_call_operand.hbm [shape: f32[2,8,32], index: 18, kind: output, shape index: {}]
  %s19 = sld [smem:[#allocation0]]
  $region117: #{tpu_custom_call.1} parent=0
    _
  %s21 = ssub.s32 1, %s19
  %s22 = scalar_select 0, %s21, %s19
  $region1: #{tpu_custom_call.1} parent=0
    #allocation2 [shape = 'u8[8192]{0}', space=vmem, size = 0x2000, scoped, tag = 'input window, operand 0']
    #allocation3 [shape = 's32[2]{0}', space=sflag, size = 0x8, scoped, tag = 'scoped memory for tpu_custom_call.1']
    #allocation4 [shape = 's32[2]{0}', space=sflag, size = 0x8, scoped, tag = 'scoped memory for tpu_custom_call.1']
    #allocation5 [shape = 'u8[16384]{0}', space=vmem, size = 0x4000, scoped, tag = 'input window, operand 10, single buffered']
    #allocation6 [shape = 's32[1]{0}', space=sflag, size = 0x4, scoped, tag = 'scoped memory for tpu_custom_call.1']
    #allocation7 [shape = 'u8[16384]{0}', space=vmem, size = 0x4000, scoped, tag = 'input window, operand 14, single buffered']
    #allocation8 [shape = 'u8[8192]{0}', space=vmem, size = 0x2000, scoped, tag = 'output window, operand 0']
    %23 = vsyncpa [#allocation3], 0
    %s24 = scalar_lea.sflag [#allocation3], 1
    %25 = vsyncpa %s24, 0
    %26 = vsyncpa [#allocation6], 0
    %27 = vsyncpa [#allocation4], 0
    %s28 = scalar_lea.sflag [#allocation4], 1
    %29 = vsyncpa %s28, 0
    loop: start=0, step=1, limit=4
    $region2: #{tpu_custom_call.1} parent=1 // loop_pre_header
      _
    $region3: #{tpu_custom_call.1} parent=1 // loop_header
      %s31 = sphi 0, %s35
      %p32 = scmp.ge.s32.totalorder %s31, 4
      %s41 = sphi 0, %s43
      %s44 = sphi 0, %s41
      %s45 = sphi 0, %s44
      %s61 = sphi 0, %s45
      %s67 = sphi 0, %s69
      %s70 = sphi 0, %s67
      %s71 = sphi 0, %s70
      %s87 = sphi 0, %s71
      %s91 = sphi 0, %s91
      %s93 = sphi 0, %s91
      %s94 = sphi 0, %s93
      %s108 = sphi 0, %s94
      %s112 = sphi 0, %s112
      %s114 = sphi 0, %s112
      %s115 = sphi 0, %s114
      %s129 = sphi 0, %s115
      %s133 = sphi 0, %s133
      %s135 = sphi 0, %s133
      %s136 = sphi 0, %s135
      %s150 = sphi 0, %s136
      %s154 = sphi 0, %s154
      %s156 = sphi 0, %s154
      %s157 = sphi 0, %s156
      %s171 = sphi 0, %s157
      %s175 = sphi 0, %s175
      %s177 = sphi 0, %s175
      %s178 = sphi 0, %s177
      %s192 = sphi 0, %s178
      %s196 = sphi 0, %s196
      %s198 = sphi 0, %s196
      %s199 = sphi 0, %s198
      %s213 = sphi 0, %s199
      %s217 = sphi 0, %s217
      %s219 = sphi 0, %s217
      %s220 = sphi 0, %s219
      %s234 = sphi 0, %s220
      %s238 = sphi 0, %s238
      %s240 = sphi 0, %s238
      %s241 = sphi 0, %s240
      %s255 = sphi 0, %s241
      %s259 = sphi 0, %s259
      %s261 = sphi 0, %s259
      %s262 = sphi 0, %s261
      %s276 = sphi 0, %s262
      %s280 = sphi 0, %s280
      %s282 = sphi 0, %s280
      %s283 = sphi 0, %s282
      %s297 = sphi 0, %s283
      %s301 = sphi 0, %s301
      %s303 = sphi 0, %s301
      %s304 = sphi 0, %s303
      %s318 = sphi 0, %s304
      %s322 = sphi 0, %s322
      %s324 = sphi 0, %s322
      %s325 = sphi 0, %s324
      %s339 = sphi 0, %s325
      %s343 = sphi 0, %s343
      %s345 = sphi 0, %s343
      %s346 = sphi 0, %s345
      %s360 = sphi 0, %s346
      %s364 = sphi 0, %s364
      %s366 = sphi 0, %s364
      %s367 = sphi 0, %s366
      %s381 = sphi 0, %s367
      %s385 = sphi 0, %s385
      %s387 = sphi 0, %s385
      %s388 = sphi 0, %s387
      %s402 = sphi 0, %s388
      %s406 = sphi 0, %s406
      %s408 = sphi 0, %s406
      %s409 = sphi 0, %s408
      %s423 = sphi 0, %s409
      %s429 = sphi 0, %s431
      %s432 = sphi 0, %s429
      %s433 = sphi 0, %s432
      %s449 = sphi 0, %s433
    $region4: #{tpu_custom_call.1} parent=1 // loop_header_branch
      %34 = sbr.rel (%p32) target = $region8
    $region5: #{tpu_custom_call.1} parent=1 // loop_body
      %s36 = ssub.s32 %s31, 1
      %s37 = ssub.s32 %s31, 2
      %s38 = sadd.s32 %s31, 1
      %s39 = ssub.s32 %s31, %s38
      %p40 = scmp.eq.s32.totalorder %s39, 0
      %s42 = sadd.s32 %s41, 1
      %s43 = scalar_select %p40, %s41, %s42
      %p46 = pneg %p40
      %p47 = scmp.eq.s32.totalorder %s31, 1
      %p48 = por %p46, %p47
      %p49 = scmp.ne.s32.totalorder %s41, %s44
      %p50 = scmp.eq.s32.totalorder %s31, 0
      %p51 = por %p49, %p50
      %p52 = scmp.ne.s32.totalorder %s41, %s44
      %p53 = scmp.eq.s32.totalorder %s36, 1
      %p54 = por %p52, %p53
      %p55 = scmp.ne.s32.totalorder %s44, %s45
      %p56 = scmp.eq.s32.totalorder %s36, 0
      %p57 = por %p55, %p56
      %p58 = scmp.ne.s32.totalorder %s44, %s45
      %p59 = scmp.eq.s32.totalorder %s37, 1
      %p60 = por %p58, %p59
      %p62 = scmp.ne.s32.totalorder %s45, %s61
      %p63 = scmp.eq.s32.totalorder %s37, 0
      %p64 = por %p62, %p63
      %s65 = ssub.s32 %s31, %s38
      %p66 = scmp.eq.s32.totalorder %s65, 0
      %s68 = sadd.s32 %s67, 1
      %s69 = scalar_select %p66, %s67, %s68
      %p72 = pneg %p66
      %p73 = scmp.eq.s32.totalorder %s31, 1
      %p74 = por %p72, %p73
      %p75 = scmp.ne.s32.totalorder %s67, %s70
      %p76 = scmp.eq.s32.totalorder %s31, 0
      %p77 = por %p75, %p76
      %p78 = scmp.ne.s32.totalorder %s67, %s70
      %p79 = scmp.eq.s32.totalorder %s36, 1
      %p80 = por %p78, %p79
      %p81 = scmp.ne.s32.totalorder %s70, %s71
      %p82 = scmp.eq.s32.totalorder %s36, 0
      %p83 = por %p81, %p82
      %p84 = scmp.ne.s32.totalorder %s70, %s71
      %p85 = scmp.eq.s32.totalorder %s37, 1
      %p86 = por %p84, %p85
      %p88 = scmp.ne.s32.totalorder %s71, %s87
      %p89 = scmp.eq.s32.totalorder %s37, 0
      %p90 = por %p88, %p89
      %s92 = sadd.s32 %s91, 1
      %p95 = scmp.eq.s32.totalorder %s31, 1
      %p96 = scmp.ne.s32.totalorder %s91, %s93
      %p97 = scmp.eq.s32.totalorder %s31, 0
      %p98 = por %p96, %p97
      %p99 = scmp.ne.s32.totalorder %s91, %s93
      %p100 = scmp.eq.s32.totalorder %s36, 1
      %p101 = por %p99, %p100
      %p102 = scmp.ne.s32.totalorder %s93, %s94
      %p103 = scmp.eq.s32.totalorder %s36, 0
      %p104 = por %p102, %p103
      %p105 = scmp.ne.s32.totalorder %s93, %s94
      %p106 = scmp.eq.s32.totalorder %s37, 1
      %p107 = por %p105, %p106
      %p109 = scmp.ne.s32.totalorder %s94, %s108
      %p110 = scmp.eq.s32.totalorder %s37, 0
      %p111 = por %p109, %p110
      %s113 = sadd.s32 %s112, 1
      %p116 = scmp.eq.s32.totalorder %s31, 1
      %p117 = scmp.ne.s32.totalorder %s112, %s114
      %p118 = scmp.eq.s32.totalorder %s31, 0
      %p119 = por %p117, %p118
      %p120 = scmp.ne.s32.totalorder %s112, %s114
      %p121 = scmp.eq.s32.totalorder %s36, 1
      %p122 = por %p120, %p121
      %p123 = scmp.ne.s32.totalorder %s114, %s115
      %p124 = scmp.eq.s32.totalorder %s36, 0
      %p125 = por %p123, %p124
      %p126 = scmp.ne.s32.totalorder %s114, %s115
      %p127 = scmp.eq.s32.totalorder %s37, 1
      %p128 = por %p126, %p127
      %p130 = scmp.ne.s32.totalorder %s115, %s129
      %p131 = scmp.eq.s32.totalorder %s37, 0
      %p132 = por %p130, %p131
      %s134 = sadd.s32 %s133, 1
      %p137 = scmp.eq.s32.totalorder %s31, 1
      %p138 = scmp.ne.s32.totalorder %s133, %s135
      %p139 = scmp.eq.s32.totalorder %s31, 0
      %p140 = por %p138, %p139
      %p141 = scmp.ne.s32.totalorder %s133, %s135
      %p142 = scmp.eq.s32.totalorder %s36, 1
      %p143 = por %p141, %p142
      %p144 = scmp.ne.s32.totalorder %s135, %s136
      %p145 = scmp.eq.s32.totalorder %s36, 0
      %p146 = por %p144, %p145
      %p147 = scmp.ne.s32.totalorder %s135, %s136
      %p148 = scmp.eq.s32.totalorder %s37, 1
      %p149 = por %p147, %p148
      %p151 = scmp.ne.s32.totalorder %s136, %s150
      %p152 = scmp.eq.s32.totalorder %s37, 0
      %p153 = por %p151, %p152
      %s155 = sadd.s32 %s154, 1
      %p158 = scmp.eq.s32.totalorder %s31, 1
      %p159 = scmp.ne.s32.totalorder %s154, %s156
      %p160 = scmp.eq.s32.totalorder %s31, 0
      %p161 = por %p159, %p160
      %p162 = scmp.ne.s32.totalorder %s154, %s156
      %p163 = scmp.eq.s32.totalorder %s36, 1
      %p164 = por %p162, %p163
      %p165 = scmp.ne.s32.totalorder %s156, %s157
      %p166 = scmp.eq.s32.totalorder %s36, 0
      %p167 = por %p165, %p166
      %p168 = scmp.ne.s32.totalorder %s156, %s157
      %p169 = scmp.eq.s32.totalorder %s37, 1
      %p170 = por %p168, %p169
      %p172 = scmp.ne.s32.totalorder %s157, %s171
      %p173 = scmp.eq.s32.totalorder %s37, 0
      %p174 = por %p172, %p173
      %s176 = sadd.s32 %s175, 1
      %p179 = scmp.eq.s32.totalorder %s31, 1
      %p180 = scmp.ne.s32.totalorder %s175, %s177
      %p181 = scmp.eq.s32.totalorder %s31, 0
      %p182 = por %p180, %p181
      %p183 = scmp.ne.s32.totalorder %s175, %s177
      %p184 = scmp.eq.s32.totalorder %s36, 1
      %p185 = por %p183, %p184
      %p186 = scmp.ne.s32.totalorder %s177, %s178
      %p187 = scmp.eq.s32.totalorder %s36, 0
      %p188 = por %p186, %p187
      %p189 = scmp.ne.s32.totalorder %s177, %s178
      %p190 = scmp.eq.s32.totalorder %s37, 1
      %p191 = por %p189, %p190
      %p193 = scmp.ne.s32.totalorder %s178, %s192
      %p194 = scmp.eq.s32.totalorder %s37, 0
      %p195 = por %p193, %p194
      %s197 = sadd.s32 %s196, 1
      %p200 = scmp.eq.s32.totalorder %s31, 1
      %p201 = scmp.ne.s32.totalorder %s196, %s198
      %p202 = scmp.eq.s32.totalorder %s31, 0
      %p203 = por %p201, %p202
      %p204 = scmp.ne.s32.totalorder %s196, %s198
      %p205 = scmp.eq.s32.totalorder %s36, 1
      %p206 = por %p204, %p205
      %p207 = scmp.ne.s32.totalorder %s198, %s199
      %p208 = scmp.eq.s32.totalorder %s36, 0
      %p209 = por %p207, %p208
      %p210 = scmp.ne.s32.totalorder %s198, %s199
      %p211 = scmp.eq.s32.totalorder %s37, 1
      %p212 = por %p210, %p211
      %p214 = scmp.ne.s32.totalorder %s199, %s213
      %p215 = scmp.eq.s32.totalorder %s37, 0
      %p216 = por %p214, %p215
      %s218 = sadd.s32 %s217, 1
      %p221 = scmp.eq.s32.totalorder %s31, 1
      %p222 = scmp.ne.s32.totalorder %s217, %s219
      %p223 = scmp.eq.s32.totalorder %s31, 0
      %p224 = por %p222, %p223
      %p225 = scmp.ne.s32.totalorder %s217, %s219
      %p226 = scmp.eq.s32.totalorder %s36, 1
      %p227 = por %p225, %p226
      %p228 = scmp.ne.s32.totalorder %s219, %s220
      %p229 = scmp.eq.s32.totalorder %s36, 0
      %p230 = por %p228, %p229
      %p231 = scmp.ne.s32.totalorder %s219, %s220
      %p232 = scmp.eq.s32.totalorder %s37, 1
      %p233 = por %p231, %p232
      %p235 = scmp.ne.s32.totalorder %s220, %s234
      %p236 = scmp.eq.s32.totalorder %s37, 0
      %p237 = por %p235, %p236
      %s239 = sadd.s32 %s238, 1
      %p242 = scmp.eq.s32.totalorder %s31, 1
      %p243 = scmp.ne.s32.totalorder %s238, %s240
      %p244 = scmp.eq.s32.totalorder %s31, 0
      %p245 = por %p243, %p244
      %p246 = scmp.ne.s32.totalorder %s238, %s240
      %p247 = scmp.eq.s32.totalorder %s36, 1
      %p248 = por %p246, %p247
      %p249 = scmp.ne.s32.totalorder %s240, %s241
      %p250 = scmp.eq.s32.totalorder %s36, 0
      %p251 = por %p249, %p250
      %p252 = scmp.ne.s32.totalorder %s240, %s241
      %p253 = scmp.eq.s32.totalorder %s37, 1
      %p254 = por %p252, %p253
      %p256 = scmp.ne.s32.totalorder %s241, %s255
      %p257 = scmp.eq.s32.totalorder %s37, 0
      %p258 = por %p256, %p257
      %s260 = sadd.s32 %s259, 1
      %p263 = scmp.eq.s32.totalorder %s31, 1
      %p264 = scmp.ne.s32.totalorder %s259, %s261
      %p265 = scmp.eq.s32.totalorder %s31, 0
      %p266 = por %p264, %p265
      %p267 = scmp.ne.s32.totalorder %s259, %s261
      %p268 = scmp.eq.s32.totalorder %s36, 1
      %p269 = por %p267, %p268
      %p270 = scmp.ne.s32.totalorder %s261, %s262
      %p271 = scmp.eq.s32.totalorder %s36, 0
      %p272 = por %p270, %p271
      %p273 = scmp.ne.s32.totalorder %s261, %s262
      %p274 = scmp.eq.s32.totalorder %s37, 1
      %p275 = por %p273, %p274
      %p277 = scmp.ne.s32.totalorder %s262, %s276
      %p278 = scmp.eq.s32.totalorder %s37, 0
      %p279 = por %p277, %p278
      %s281 = sadd.s32 %s280, 1
      %p284 = scmp.eq.s32.totalorder %s31, 1
      %p285 = scmp.ne.s32.totalorder %s280, %s282
      %p286 = scmp.eq.s32.totalorder %s31, 0
      %p287 = por %p285, %p286
      %p288 = scmp.ne.s32.totalorder %s280, %s282
      %p289 = scmp.eq.s32.totalorder %s36, 1
      %p290 = por %p288, %p289
      %p291 = scmp.ne.s32.totalorder %s282, %s283
      %p292 = scmp.eq.s32.totalorder %s36, 0
      %p293 = por %p291, %p292
      %p294 = scmp.ne.s32.totalorder %s282, %s283
      %p295 = scmp.eq.s32.totalorder %s37, 1
      %p296 = por %p294, %p295
      %p298 = scmp.ne.s32.totalorder %s283, %s297
      %p299 = scmp.eq.s32.totalorder %s37, 0
      %p300 = por %p298, %p299
      %s302 = sadd.s32 %s301, 1
      %p305 = scmp.eq.s32.totalorder %s31, 1
      %p306 = scmp.ne.s32.totalorder %s301, %s303
      %p307 = scmp.eq.s32.totalorder %s31, 0
      %p308 = por %p306, %p307
      %p309 = scmp.ne.s32.totalorder %s301, %s303
      %p310 = scmp.eq.s32.totalorder %s36, 1
      %p311 = por %p309, %p310
      %p312 = scmp.ne.s32.totalorder %s303, %s304
      %p313 = scmp.eq.s32.totalorder %s36, 0
      %p314 = por %p312, %p313
      %p315 = scmp.ne.s32.totalorder %s303, %s304
      %p316 = scmp.eq.s32.totalorder %s37, 1
      %p317 = por %p315, %p316
      %p319 = scmp.ne.s32.totalorder %s304, %s318
      %p320 = scmp.eq.s32.totalorder %s37, 0
      %p321 = por %p319, %p320
      %s323 = sadd.s32 %s322, 1
      %p326 = scmp.eq.s32.totalorder %s31, 1
      %p327 = scmp.ne.s32.totalorder %s322, %s324
      %p328 = scmp.eq.s32.totalorder %s31, 0
      %p329 = por %p327, %p328
      %p330 = scmp.ne.s32.totalorder %s322, %s324
      %p331 = scmp.eq.s32.totalorder %s36, 1
      %p332 = por %p330, %p331
      %p333 = scmp.ne.s32.totalorder %s324, %s325
      %p334 = scmp.eq.s32.totalorder %s36, 0
      %p335 = por %p333, %p334
      %p336 = scmp.ne.s32.totalorder %s324, %s325
      %p337 = scmp.eq.s32.totalorder %s37, 1
      %p338 = por %p336, %p337
      %p340 = scmp.ne.s32.totalorder %s325, %s339
      %p341 = scmp.eq.s32.totalorder %s37, 0
      %p342 = por %p340, %p341
      %s344 = sadd.s32 %s343, 1
      %p347 = scmp.eq.s32.totalorder %s31, 1
      %p348 = scmp.ne.s32.totalorder %s343, %s345
      %p349 = scmp.eq.s32.totalorder %s31, 0
      %p350 = por %p348, %p349
      %p351 = scmp.ne.s32.totalorder %s343, %s345
      %p352 = scmp.eq.s32.totalorder %s36, 1
      %p353 = por %p351, %p352
      %p354 = scmp.ne.s32.totalorder %s345, %s346
      %p355 = scmp.eq.s32.totalorder %s36, 0
      %p356 = por %p354, %p355
      %p357 = scmp.ne.s32.totalorder %s345, %s346
      %p358 = scmp.eq.s32.totalorder %s37, 1
      %p359 = por %p357, %p358
      %p361 = scmp.ne.s32.totalorder %s346, %s360
      %p362 = scmp.eq.s32.totalorder %s37, 0
      %p363 = por %p361, %p362
      %s365 = sadd.s32 %s364, 1
      %p368 = scmp.eq.s32.totalorder %s31, 1
      %p369 = scmp.ne.s32.totalorder %s364, %s366
      %p370 = scmp.eq.s32.totalorder %s31, 0
      %p371 = por %p369, %p370
      %p372 = scmp.ne.s32.totalorder %s364, %s366
      %p373 = scmp.eq.s32.totalorder %s36, 1
      %p374 = por %p372, %p373
      %p375 = scmp.ne.s32.totalorder %s366, %s367
      %p376 = scmp.eq.s32.totalorder %s36, 0
      %p377 = por %p375, %p376
      %p378 = scmp.ne.s32.totalorder %s366, %s367
      %p379 = scmp.eq.s32.totalorder %s37, 1
      %p380 = por %p378, %p379
      %p382 = scmp.ne.s32.totalorder %s367, %s381
      %p383 = scmp.eq.s32.totalorder %s37, 0
      %p384 = por %p382, %p383
      %s386 = sadd.s32 %s385, 1
      %p389 = scmp.eq.s32.totalorder %s31, 1
      %p390 = scmp.ne.s32.totalorder %s385, %s387
      %p391 = scmp.eq.s32.totalorder %s31, 0
      %p392 = por %p390, %p391
      %p393 = scmp.ne.s32.totalorder %s385, %s387
      %p394 = scmp.eq.s32.totalorder %s36, 1
      %p395 = por %p393, %p394
      %p396 = scmp.ne.s32.totalorder %s387, %s388
      %p397 = scmp.eq.s32.totalorder %s36, 0
      %p398 = por %p396, %p397
      %p399 = scmp.ne.s32.totalorder %s387, %s388
      %p400 = scmp.eq.s32.totalorder %s37, 1
      %p401 = por %p399, %p400
      %p403 = scmp.ne.s32.totalorder %s388, %s402
      %p404 = scmp.eq.s32.totalorder %s37, 0
      %p405 = por %p403, %p404
      %s407 = sadd.s32 %s406, 1
      %p410 = scmp.eq.s32.totalorder %s31, 1
      %p411 = scmp.ne.s32.totalorder %s406, %s408
      %p412 = scmp.eq.s32.totalorder %s31, 0
      %p413 = por %p411, %p412
      %p414 = scmp.ne.s32.totalorder %s406, %s408
      %p415 = scmp.eq.s32.totalorder %s36, 1
      %p416 = por %p414, %p415
      %p417 = scmp.ne.s32.totalorder %s408, %s409
      %p418 = scmp.eq.s32.totalorder %s36, 0
      %p419 = por %p417, %p418
      %p420 = scmp.ne.s32.totalorder %s408, %s409
      %p421 = scmp.eq.s32.totalorder %s37, 1
      %p422 = por %p420, %p421
      %p424 = scmp.ne.s32.totalorder %s409, %s423
      %p425 = scmp.eq.s32.totalorder %s37, 0
      %p426 = por %p424, %p425
      %s427 = ssub.s32 %s31, %s38
      %p428 = scmp.eq.s32.totalorder %s427, 0
      %s430 = sadd.s32 %s429, 1
      %s431 = scalar_select %p428, %s429, %s430
      %p434 = pneg %p428
      %p435 = scmp.eq.s32.totalorder %s31, 1
      %p436 = por %p434, %p435
      %p437 = scmp.ne.s32.totalorder %s429, %s432
      %p438 = scmp.eq.s32.totalorder %s31, 0
      %p439 = por %p437, %p438
      %p440 = scmp.ne.s32.totalorder %s429, %s432
      %p441 = scmp.eq.s32.totalorder %s36, 1
      %p442 = por %p440, %p441
      %p443 = scmp.ne.s32.totalorder %s432, %s433
      %p444 = scmp.eq.s32.totalorder %s36, 0
      %p445 = por %p443, %p444
      %p446 = scmp.ne.s32.totalorder %s432, %s433
      %p447 = scmp.eq.s32.totalorder %s37, 1
      %p448 = por %p446, %p447
      %p450 = scmp.ne.s32.totalorder %s433, %s449
      %p451 = scmp.eq.s32.totalorder %s37, 0
      %p452 = por %p450, %p451
      %p453 = scmp.le.s32.totalorder 1, %s31
      %p454 = scmp.lt.s32.totalorder %s31, 3
      %p455 = pnand %p453, %p454
      %p456 = pneg %p455
      // Predicated region
      $region9: #{tpu_custom_call.1} parent=5 // pred_check
        _
      $region10: #{tpu_custom_call.1} parent=5 // pred_check_branch
        %458 = sbr.rel (%p455) target = $region12
      $region11: #{tpu_custom_call.1} parent=5 // pred_region
        %s459 = ssub.s32 %s31, 1
        // Predicated region
        $region13: #{tpu_custom_call.1} parent=11 // pred_check
          %p460 = pneg %p104
        $region14: #{tpu_custom_call.1} parent=11 // pred_check_branch
          %462 = sbr.rel (%p460) target = $region16
        $region15: #{tpu_custom_call.1} parent=11 // pred_region
          _
        $region16: #{tpu_custom_call.1} parent=11 // pred_fallthru
          _
        // Predicated region
        $region17: #{tpu_custom_call.1} parent=11 // pred_check
          %p463 = pneg %p125
        $region18: #{tpu_custom_call.1} parent=11 // pred_check_branch
          %465 = sbr.rel (%p463) target = $region20
        $region19: #{tpu_custom_call.1} parent=11 // pred_region
          _
        $region20: #{tpu_custom_call.1} parent=11 // pred_fallthru
          _
        // Predicated region
        $region21: #{tpu_custom_call.1} parent=11 // pred_check
          %p466 = pneg %p146
        $region22: #{tpu_custom_call.1} parent=11 // pred_check_branch
          %468 = sbr.rel (%p466) target = $region24
        $region23: #{tpu_custom_call.1} parent=11 // pred_region
          _
        $region24: #{tpu_custom_call.1} parent=11 // pred_fallthru
          _
        // Predicated region
        $region25: #{tpu_custom_call.1} parent=11 // pred_check
          %p469 = pneg %p167
        $region26: #{tpu_custom_call.1} parent=11 // pred_check_branch
          %471 = sbr.rel (%p469) target = $region28
        $region27: #{tpu_custom_call.1} parent=11 // pred_region
          _
        $region28: #{tpu_custom_call.1} parent=11 // pred_fallthru
          _
        // Predicated region
        $region29: #{tpu_custom_call.1} parent=11 // pred_check
          %p472 = pneg %p188
        $region30: #{tpu_custom_call.1} parent=11 // pred_check_branch
          %474 = sbr.rel (%p472) target = $region32
        $region31: #{tpu_custom_call.1} parent=11 // pred_region
          _
        $region32: #{tpu_custom_call.1} parent=11 // pred_fallthru
          _
        // Predicated region
        $region33: #{tpu_custom_call.1} parent=11 // pred_check
          %p475 = pneg %p209
        $region34: #{tpu_custom_call.1} parent=11 // pred_check_branch
          %477 = sbr.rel (%p475) target = $region36
        $region35: #{tpu_custom_call.1} parent=11 // pred_region
          _
        $region36: #{tpu_custom_call.1} parent=11 // pred_fallthru
          _
        // Predicated region
        $region37: #{tpu_custom_call.1} parent=11 // pred_check
          %p478 = pneg %p230
        $region38: #{tpu_custom_call.1} parent=11 // pred_check_branch
          %480 = sbr.rel (%p478) target = $region40
        $region39: #{tpu_custom_call.1} parent=11 // pred_region
          _
        $region40: #{tpu_custom_call.1} parent=11 // pred_fallthru
          _
        // Predicated region
        $region41: #{tpu_custom_call.1} parent=11 // pred_check
          %p481 = pneg %p251
        $region42: #{tpu_custom_call.1} parent=11 // pred_check_branch
          %483 = sbr.rel (%p481) target = $region44
        $region43: #{tpu_custom_call.1} parent=11 // pred_region
          _
        $region44: #{tpu_custom_call.1} parent=11 // pred_fallthru
          _
        // Predicated region
        $region45: #{tpu_custom_call.1} parent=11 // pred_check
          %p484 = pneg %p272
        $region46: #{tpu_custom_call.1} parent=11 // pred_check_branch
          %486 = sbr.rel (%p484) target = $region48
        $region47: #{tpu_custom_call.1} parent=11 // pred_region
          %s488 = ssub.s32 512, 512
          %489 = vsyncadd [#allocation6], %s488
          %s490 = sshll.u32 [#allocation5], 4
          %s491 = int_to_ptr.vmem [resolvable:$true] %s490
          %496 = dma.hbm_to_vmem [thread:$0]  %s10, 512, %s491, [#allocation6], 128, 128, 8
        $region48: #{tpu_custom_call.1} parent=11 // pred_fallthru
          _
        // Predicated region
        $region49: #{tpu_custom_call.1} parent=11 // pred_check
          %p497 = pneg %p293
        $region50: #{tpu_custom_call.1} parent=11 // pred_check_branch
          %499 = sbr.rel (%p497) target = $region52
        $region51: #{tpu_custom_call.1} parent=11 // pred_region
          _
        $region52: #{tpu_custom_call.1} parent=11 // pred_fallthru
          _
        // Predicated region
        $region53: #{tpu_custom_call.1} parent=11 // pred_check
          %p500 = pneg %p314
        $region54: #{tpu_custom_call.1} parent=11 // pred_check_branch
          %502 = sbr.rel (%p500) target = $region56
        $region55: #{tpu_custom_call.1} parent=11 // pred_region
          _
        $region56: #{tpu_custom_call.1} parent=11 // pred_fallthru
          _
        // Predicated region
        $region57: #{tpu_custom_call.1} parent=11 // pred_check
          %p503 = pneg %p335
        $region58: #{tpu_custom_call.1} parent=11 // pred_check_branch
          %505 = sbr.rel (%p503) target = $region60
        $region59: #{tpu_custom_call.1} parent=11 // pred_region
          _
        $region60: #{tpu_custom_call.1} parent=11 // pred_fallthru
          _
        // Predicated region
        $region61: #{tpu_custom_call.1} parent=11 // pred_check
          %p506 = pneg %p356
        $region62: #{tpu_custom_call.1} parent=11 // pred_check_branch
          %508 = sbr.rel (%p506) target = $region64
        $region63: #{tpu_custom_call.1} parent=11 // pred_region
          %s510 = ssub.s32 512, 512
          %511 = vsyncadd [#allocation6], %s510
          %s512 = sshll.u32 [#allocation7], 4
          %s513 = int_to_ptr.vmem [resolvable:$true] %s512
          %518 = dma.hbm_to_vmem [thread:$0]  %s14, 512, %s513, [#allocation6], 128, 128, 8
        $region64: #{tpu_custom_call.1} parent=11 // pred_fallthru
          _
        // Predicated region
        $region65: #{tpu_custom_call.1} parent=11 // pred_check
          %p519 = pneg %p377
        $region66: #{tpu_custom_call.1} parent=11 // pred_check_branch
          %521 = sbr.rel (%p519) target = $region68
        $region67: #{tpu_custom_call.1} parent=11 // pred_region
          _
        $region68: #{tpu_custom_call.1} parent=11 // pred_fallthru
          _
        // Predicated region
        $region69: #{tpu_custom_call.1} parent=11 // pred_check
          %p522 = pneg %p398
        $region70: #{tpu_custom_call.1} parent=11 // pred_check_branch
          %524 = sbr.rel (%p522) target = $region72
        $region71: #{tpu_custom_call.1} parent=11 // pred_region
          _
        $region72: #{tpu_custom_call.1} parent=11 // pred_fallthru
          _
        // Predicated region
        $region73: #{tpu_custom_call.1} parent=11 // pred_check
          %p525 = pneg %p419
        $region74: #{tpu_custom_call.1} parent=11 // pred_check_branch
          %527 = sbr.rel (%p525) target = $region76
        $region75: #{tpu_custom_call.1} parent=11 // pred_region
          _
        $region76: #{tpu_custom_call.1} parent=11 // pred_fallthru
          _
      $region12: #{tpu_custom_call.1} parent=5 // pred_fallthru
        _
      %p528 = scmp.lt.s32.totalorder %s31, 2
      // Predicated region
      $region77: #{tpu_custom_call.1} parent=5 // pred_check
        %p529 = pneg %p528
      $region78: #{tpu_custom_call.1} parent=5 // pred_check_branch
        %531 = sbr.rel (%p529) target = $region80
      $region79: #{tpu_custom_call.1} parent=5 // pred_region
        // Predicated region
        $region81: #{tpu_custom_call.1} parent=79 // pred_check
          %p532 = pneg %p51
        $region82: #{tpu_custom_call.1} parent=79 // pred_check_branch
          %534 = sbr.rel (%p532) target = $region84
        $region83: #{tpu_custom_call.1} parent=79 // pred_region
          %s535 = sand.u32 %s41, 1
          %s536 = scalar_lea.sflag [#allocation3], %s535
          %s537 = sand.u32 %s41, 1
          %s538 = smul.addr %s537, 8
          %s539 = scalar_lea.vmem [#allocation2], %s538
          %s541 = ssub.s32 128, 128
          %542 = vsyncadd %s536, %s541
          %s543 = smul.addr %s31, 128
          %s544 = scalar_lea.hbm %s0, %s543
          %s546 = sshll.u32 %s539, 4
          %s547 = int_to_ptr.vmem [resolvable:$true] %s546
          %549 = dma.hbm_to_vmem [thread:$0]  %s544, 128, %s547, %s536
        $region84: #{tpu_custom_call.1} parent=79 // pred_fallthru
          _
        // Predicated region
        $region85: #{tpu_custom_call.1} parent=79 // pred_check
          %p550 = pneg %p77
        $region86: #{tpu_custom_call.1} parent=79 // pred_check_branch
          %552 = sbr.rel (%p550) target = $region88
        $region87: #{tpu_custom_call.1} parent=79 // pred_region
          %p553 = scmp.lt.s32.totalorder %s31, 1
          %s554 = scalar_select %p553, %s31, 1
          %s555 = scalar_lea.vmem %s1, %s554
        $region88: #{tpu_custom_call.1} parent=79 // pred_fallthru
          _
      $region80: #{tpu_custom_call.1} parent=5 // pred_fallthru
        _
      %p556 = scmp.le.s32.totalorder 1, %s31
      %p557 = scmp.lt.s32.totalorder %s31, 3
      %p558 = pnand %p556, %p557
      %p559 = pneg %p558
      // Predicated region
      $region89: #{tpu_custom_call.1} parent=5 // pred_check
        _
      $region90: #{tpu_custom_call.1} parent=5 // pred_check_branch
        %561 = sbr.rel (%p558) target = $region92
      $region91: #{tpu_custom_call.1} parent=5 // pred_region
        %s562 = ssub.s32 %s31, 1
        %s563 = sand.u32 %s44, 1
        %s564 = scalar_lea.sflag [#allocation3], %s563
        %s565 = sand.u32 %s44, 1
        %s566 = smul.addr %s565, 8
        %s567 = scalar_lea.vmem [#allocation2], %s566
        // Predicated region
        $region93: #{tpu_custom_call.1} parent=91 // pred_check
          %p568 = pneg %p57
        $region94: #{tpu_custom_call.1} parent=91 // pred_check_branch
          %570 = sbr.rel (%p568) target = $region96
        $region95: #{tpu_custom_call.1} parent=91 // pred_region
          %571 = dma.done %s564, 128
        $region96: #{tpu_custom_call.1} parent=91 // pred_fallthru
          _
        // Predicated region
        $region97: #{tpu_custom_call.1} parent=91 // pred_check
          %p572 = pneg %p272
        $region98: #{tpu_custom_call.1} parent=91 // pred_check_branch
          %574 = sbr.rel (%p572) target = $region100
        $region99: #{tpu_custom_call.1} parent=91 // pred_region
          %575 = dma.done [#allocation6], 512
        $region100: #{tpu_custom_call.1} parent=91 // pred_fallthru
          _
        // Predicated region
        $region101: #{tpu_custom_call.1} parent=91 // pred_check
          %p576 = pneg %p356
        $region102: #{tpu_custom_call.1} parent=91 // pred_check_branch
          %578 = sbr.rel (%p576) target = $region104
        $region103: #{tpu_custom_call.1} parent=91 // pred_region
          %579 = dma.done [#allocation6], 512
        $region104: #{tpu_custom_call.1} parent=91 // pred_fallthru
          _
        %s580 = sand.u32 %s44, 1
        %s581 = scalar_lea.sflag [#allocation3], %s580
        %s582 = sand.u32 %s44, 1
        %s583 = smul.addr %s582, 8
        %s584 = scalar_lea.vmem [#allocation2], %s583
        %p585 = pneg %p57
        %p586 = pneg %p54
        %p587 = scmp.lt.s32.totalorder %s36, 1
        %s588 = scalar_select %p587, %s36, 1
        %s589 = scalar_lea.vmem %s1, %s588
        %p590 = pneg %p83
        %p591 = pneg %p80
        %p592 = pneg %p104
        %p593 = pneg %p101
        %p594 = pneg %p125
        %p595 = pneg %p122
        %p596 = pneg %p146
        %p597 = pneg %p143
        %p598 = pneg %p167
        %p599 = pneg %p164
        %p600 = pneg %p188
        %p601 = pneg %p185
        %p602 = pneg %p209
        %p603 = pneg %p206
        %p604 = pneg %p230
        %p605 = pneg %p227
        %p606 = pneg %p251
        %p607 = pneg %p248
        %p608 = pneg %p272
        %p609 = pneg %p269
        %p610 = pneg %p293
        %p611 = pneg %p290
        %p612 = pneg %p314
        %p613 = pneg %p311
        %p614 = pneg %p335
        %p615 = pneg %p332
        %p616 = pneg %p356
        %p617 = pneg %p353
        %p618 = pneg %p377
        %p619 = pneg %p374
        %p620 = pneg %p398
        %p621 = pneg %p395
        %p622 = pneg %p419
        %p623 = pneg %p416
        %p624 = pneg %p445
        %p625 = pneg %p442
        %s626 = sand.u32 %s432, 1
        %s627 = scalar_lea.sflag [#allocation4], %s626
        %s628 = sand.u32 %s432, 1
        %s629 = smul.addr %s628, 8
        %s630 = scalar_lea.vmem [#allocation8], %s629
        %p631 = scmp.lt.s32.totalorder %s36, 1
        %s632 = scalar_select %p631, %s36, 1
        %s633 = scalar_lea.vmem %s1, %s632
        %v634 = vld [vmem:[%s567] sm:$0xff]
        %v635 = vld [vmem:[%s2] sm:$0x1]
        %v636 = vld [vmem:[%s3] sm:$0x1]
        %vm637 = vcmask 261120
        %v638 = vsel %vm637, %v634, 0.0
        %639 = vadd.xlane.f32.xlu0 %v638
        %v640 = vpop.xlane.xlu0 %639
        %v641 = vrcp.pop 32.0
        %v642 = vmul.f32 %v640, %v641
        %v643 = vsub.f32 %v634, %v642
        %v644 = vmul.f32 %v643, %v643
        %v645 = vsel %vm637, %v644, 0.0
        %646 = vadd.xlane.f32.xlu0 %v645
        %v647 = vpop.xlane.xlu0 %646
        %v648 = vmul.f32 %v647, %v641
        %v649 = vadd.f32 %v648, 1e-05
        %v650 = vrsqrt.pop %v649
        %v651 = vmul.f32 %v643, %v650
        %v653 = vlaneseq
        %v654 = vshrl.u32 %v653, 7
        %v655 = vsub.s32 0, %v654
        %v656 = vrot.slane %v635, %v655
        %v658 = vmul.f32 %v651, %v656
        %v660 = vlaneseq
        %v661 = vshrl.u32 %v660, 7
        %v662 = vsub.s32 0, %v661
        %v663 = vrot.slane %v636, %v662
        %v665 = vadd.f32 %v658, %v663
        %v666 = vld [vmem:[%s4] sm:$0xff]
        %v667 = vld [vmem:[%s4 + $0x8] sm:$0xff]
        %v668 = vld [vmem:[%s4 + $0x10] sm:$0xff]
        %v669 = vld [vmem:[%s4 + $0x18] sm:$0xff]
        %v670 = vld [vmem:[%s5] sm:$0x1]
        %v672 = vlaneseq
        %v673 = vshrl.u32 %v672, 7
        %v674 = vsub.s32 0, %v673
        %v675 = vrot.slane %v670, %v674
        %v678 = vsel %vm637, %v665, 0
        %680 = vmatprep.subr.mxu0 0.0
        %681 = vmatpush1.msra.mxu0 %v666
        %682 = vmatprep.subr.mxu0 0.0
        %683 = vmatpush1.msra.mxu0 %v667
        %684 = vmatprep.subr.mxu0 0.0
        %685 = vmatpush1.msra.mxu0 %v668
        %686 = vmatprep.subr.mxu0 0.0
        %687 = vmatpush1.msra.mxu0 %v669
        %688 = vmatprep.subr.mxu0 0.0
        %689 = vmatpush1.msra.mxu0 0.0
        %690 = vmatprep.subr.mxu0 0.0
        %691 = vmatpush1.msra.mxu0 0.0
        %692 = vmatprep.subr.mxu0 0.0
        %693 = vmatpush1.msra.mxu0 0.0
        %694 = vmatprep.subr.mxu0 0.0
        %695 = vmatpush1.msra.mxu0 0.0
        %696 = vmatprep.subr.mxu0 0.0
        %697 = vmatpush1.msra.mxu0 0.0
        %698 = vmatprep.subr.mxu0 0.0
        %699 = vmatpush1.msra.mxu0 0.0
        %700 = vmatprep.subr.mxu0 0.0
        %701 = vmatpush1.msra.mxu0 0.0
        %702 = vmatprep.subr.mxu0 0.0
        %703 = vmatpush1.msra.mxu0 0.0
        %704 = vmatprep.subr.mxu0 0.0
        %705 = vmatpush1.msra.mxu0 0.0
        %706 = vmatprep.subr.mxu0 0.0
        %707 = vmatpush1.msra.mxu0 0.0
        %708 = vmatprep.subr.mxu0 0.0
        %709 = vmatpush1.msra.mxu0 0.0
        %710 = vmatprep.subr.mxu0 0.0
        %711 = vmatpush1.msra.mxu0 0.0
        %712 = vmatprep.subr.mxu0 0.0
        %713 = vmatpush1.msra.mxu0 0.0
        %714 = vmatprep.subr.mxu0 0.0
        %715 = vmatpush1.msra.mxu0 0.0
        %716 = vmatprep.subr.mxu0 0.0
        %717 = vmatpush1.msra.mxu0 0.0
        %718 = vmatprep.subr.mxu0 0.0
        %719 = vmatpush1.msra.mxu0 0.0
        %720 = vmatprep.subr.mxu0 0.0
        %721 = vmatpush1.msra.mxu0 0.0
        %722 = vmatprep.subr.mxu0 0.0
        %723 = vmatpush1.msra.mxu0 0.0
        %724 = vmatprep.subr.mxu0 0.0
        %725 = vmatpush1.msra.mxu0 0.0
        %726 = vmatprep.subr.mxu0 0.0
        %727 = vmatpush1.msra.mxu0 0.0
        %728 = vmatprep.subr.mxu0 0.0
        %729 = vmatpush1.msra.mxu0 0.0
        %730 = vmatprep.subr.mxu0 0.0
        %731 = vmatpush1.msra.mxu0 0.0
        %732 = vmatprep.subr.mxu0 0.0
        %733 = vmatpush1.msra.mxu0 0.0
        %734 = vmatprep.subr.mxu0 0.0
        %735 = vmatpush1.msra.mxu0 0.0
        %736 = vmatprep.subr.mxu0 0.0
        %737 = vmatpush1.msra.mxu0 0.0
        %738 = vmatprep.subr.mxu0 0.0
        %739 = vmatpush1.msra.mxu0 0.0
        %740 = vmatprep.subr.mxu0 0.0
        %741 = vmatpush1.msra.mxu0 0.0
        %742 = vmatprep.subr.mxu0 0.0
        %743 = vmatpush1.msra.mxu0 0.0
        %744 = vmatprep.mubr.f32.mxu0 0.0
        %745 = vmatmul.mubr.f32.gmra.mrb[0].mxu0 %v678
        %v746 = vpop.f32.mrb[0].mxu0
        %v747 = vadd.f32 %v675, %v746
        %v748 = vpop.f32.mrb[0].mxu0
        %749 = vdwg.mxu0
        %v750 = vld [vmem:[%s6] sm:$0xff]
        %v751 = vld [vmem:[%s6 + $0x8] sm:$0xff]
        %v752 = vld [vmem:[%s6 + $0x10] sm:$0xff]
        %v753 = vld [vmem:[%s6 + $0x18] sm:$0xff]
        %v754 = vld [vmem:[%s7] sm:$0x1]
        %v756 = vlaneseq
        %v757 = vshrl.u32 %v756, 7
        %v758 = vsub.s32 0, %v757
        %v759 = vrot.slane %v754, %v758
        %761 = vmatprep.subr.mxu0 0.0
        %762 = vmatpush1.msra.mxu0 %v750
        %763 = vmatprep.subr.mxu0 0.0
        %764 = vmatpush1.msra.mxu0 %v751
        %765 = vmatprep.subr.mxu0 0.0
        %766 = vmatpush1.msra.mxu0 %v752
        %767 = vmatprep.subr.mxu0 0.0
        %768 = vmatpush1.msra.mxu0 %v753
        %769 = vmatprep.subr.mxu0 0.0
        %770 = vmatpush1.msra.mxu0 0.0
        %771 = vmatprep.subr.mxu0 0.0
        %772 = vmatpush1.msra.mxu0 0.0
        %773 = vmatprep.subr.mxu0 0.0
        %774 = vmatpush1.msra.mxu0 0.0
        %775 = vmatprep.subr.mxu0 0.0
        %776 = vmatpush1.msra.mxu0 0.0
        %777 = vmatprep.subr.mxu0 0.0
        %778 = vmatpush1.msra.mxu0 0.0
        %779 = vmatprep.subr.mxu0 0.0
        %780 = vmatpush1.msra.mxu0 0.0
        %781 = vmatprep.subr.mxu0 0.0
        %782 = vmatpush1.msra.mxu0 0.0
        %783 = vmatprep.subr.mxu0 0.0
        %784 = vmatpush1.msra.mxu0 0.0
        %785 = vmatprep.subr.mxu0 0.0
        %786 = vmatpush1.msra.mxu0 0.0
        %787 = vmatprep.subr.mxu0 0.0
        %788 = vmatpush1.msra.mxu0 0.0
        %789 = vmatprep.subr.mxu0 0.0
        %790 = vmatpush1.msra.mxu0 0.0
        %791 = vmatprep.subr.mxu0 0.0
        %792 = vmatpush1.msra.mxu0 0.0
        %793 = vmatprep.subr.mxu0 0.0
        %794 = vmatpush1.msra.mxu0 0.0
        %795 = vmatprep.subr.mxu0 0.0
        %796 = vmatpush1.msra.mxu0 0.0
        %797 = vmatprep.subr.mxu0 0.0
        %798 = vmatpush1.msra.mxu0 0.0
        %799 = vmatprep.subr.mxu0 0.0
        %800 = vmatpush1.msra.mxu0 0.0
        %801 = vmatprep.subr.mxu0 0.0
        %802 = vmatpush1.msra.mxu0 0.0
        %803 = vmatprep.subr.mxu0 0.0
        %804 = vmatpush1.msra.mxu0 0.0
        %805 = vmatprep.subr.mxu0 0.0
        %806 = vmatpush1.msra.mxu0 0.0
        %807 = vmatprep.subr.mxu0 0.0
        %808 = vmatpush1.msra.mxu0 0.0
        %809 = vmatprep.subr.mxu0 0.0
        %810 = vmatpush1.msra.mxu0 0.0
        %811 = vmatprep.subr.mxu0 0.0
        %812 = vmatpush1.msra.mxu0 0.0
        %813 = vmatprep.subr.mxu0 0.0
        %814 = vmatpush1.msra.mxu0 0.0
        %815 = vmatprep.subr.mxu0 0.0
        %816 = vmatpush1.msra.mxu0 0.0
        %817 = vmatprep.subr.mxu0 0.0
        %818 = vmatpush1.msra.mxu0 0.0
        %819 = vmatprep.subr.mxu0 0.0
        %820 = vmatpush1.msra.mxu0 0.0
        %821 = vmatprep.subr.mxu0 0.0
        %822 = vmatpush1.msra.mxu0 0.0
        %823 = vmatprep.subr.mxu0 0.0
        %824 = vmatpush1.msra.mxu0 0.0
        %825 = vmatprep.mubr.f32.mxu0 0.0
        %826 = vmatmul.mubr.f32.gmra.mrb[0].mxu0 %v678
        %v827 = vpop.f32.mrb[0].mxu0
        %v828 = vadd.f32 %v759, %v827
        %v829 = vpop.f32.mrb[0].mxu0
        %830 = vdwg.mxu0
        %v831 = vld [vmem:[%s8] sm:$0xff]
        %v832 = vld [vmem:[%s8 + $0x8] sm:$0xff]
        %v833 = vld [vmem:[%s8 + $0x10] sm:$0xff]
        %v834 = vld [vmem:[%s8 + $0x18] sm:$0xff]
        %v835 = vld [vmem:[%s9] sm:$0x1]
        %v837 = vlaneseq
        %v838 = vshrl.u32 %v837, 7
        %v839 = vsub.s32 0, %v838
        %v840 = vrot.slane %v835, %v839
        %842 = vmatprep.subr.mxu0 0.0
        %843 = vmatpush1.msra.mxu0 %v831
        %844 = vmatprep.subr.mxu0 0.0
        %845 = vmatpush1.msra.mxu0 %v832
        %846 = vmatprep.subr.mxu0 0.0
        %847 = vmatpush1.msra.mxu0 %v833
        %848 = vmatprep.subr.mxu0 0.0
        %849 = vmatpush1.msra.mxu0 %v834
        %850 = vmatprep.subr.mxu0 0.0
        %851 = vmatpush1.msra.mxu0 0.0
        %852 = vmatprep.subr.mxu0 0.0
        %853 = vmatpush1.msra.mxu0 0.0
        %854 = vmatprep.subr.mxu0 0.0
        %855 = vmatpush1.msra.mxu0 0.0
        %856 = vmatprep.subr.mxu0 0.0
        %857 = vmatpush1.msra.mxu0 0.0
        %858 = vmatprep.subr.mxu0 0.0
        %859 = vmatpush1.msra.mxu0 0.0
        %860 = vmatprep.subr.mxu0 0.0
        %861 = vmatpush1.msra.mxu0 0.0
        %862 = vmatprep.subr.mxu0 0.0
        %863 = vmatpush1.msra.mxu0 0.0
        %864 = vmatprep.subr.mxu0 0.0
        %865 = vmatpush1.msra.mxu0 0.0
        %866 = vmatprep.subr.mxu0 0.0
        %867 = vmatpush1.msra.mxu0 0.0
        %868 = vmatprep.subr.mxu0 0.0
        %869 = vmatpush1.msra.mxu0 0.0
        %870 = vmatprep.subr.mxu0 0.0
        %871 = vmatpush1.msra.mxu0 0.0
        %872 = vmatprep.subr.mxu0 0.0
        %873 = vmatpush1.msra.mxu0 0.0
        %874 = vmatprep.subr.mxu0 0.0
        %875 = vmatpush1.msra.mxu0 0.0
        %876 = vmatprep.subr.mxu0 0.0
        %877 = vmatpush1.msra.mxu0 0.0
        %878 = vmatprep.subr.mxu0 0.0
        %879 = vmatpush1.msra.mxu0 0.0
        %880 = vmatprep.subr.mxu0 0.0
        %881 = vmatpush1.msra.mxu0 0.0
        %882 = vmatprep.subr.mxu0 0.0
        %883 = vmatpush1.msra.mxu0 0.0
        %884 = vmatprep.subr.mxu0 0.0
        %885 = vmatpush1.msra.mxu0 0.0
        %886 = vmatprep.subr.mxu0 0.0
        %887 = vmatpush1.msra.mxu0 0.0
        %888 = vmatprep.subr.mxu0 0.0
        %889 = vmatpush1.msra.mxu0 0.0
        %890 = vmatprep.subr.mxu0 0.0
        %891 = vmatpush1.msra.mxu0 0.0
        %892 = vmatprep.subr.mxu0 0.0
        %893 = vmatpush1.msra.mxu0 0.0
        %894 = vmatprep.subr.mxu0 0.0
        %895 = vmatpush1.msra.mxu0 0.0
        %896 = vmatprep.subr.mxu0 0.0
        %897 = vmatpush1.msra.mxu0 0.0
        %898 = vmatprep.subr.mxu0 0.0
        %899 = vmatpush1.msra.mxu0 0.0
        %900 = vmatprep.subr.mxu0 0.0
        %901 = vmatpush1.msra.mxu0 0.0
        %902 = vmatprep.subr.mxu0 0.0
        %903 = vmatpush1.msra.mxu0 0.0
        %904 = vmatprep.subr.mxu0 0.0
        %905 = vmatpush1.msra.mxu0 0.0
        %906 = vmatprep.mubr.f32.mxu0 0.0
        %907 = vmatmul.mubr.f32.gmra.mrb[0].mxu0 %v678
        %v908 = vpop.f32.mrb[0].mxu0
        %v909 = vadd.f32 %v840, %v908
        %v910 = vpop.f32.mrb[0].mxu0
        %911 = vdwg.mxu0
        %v912 = vld [vmem:[%s633] sm:$0x1]
        %vm913 = vcmask 64512
        %v915 = vsel %vm913, %v747, 0
        %v918 = vsel %vm913, %v828, 0
        %920 = vmatprep.subr.mxu0 0.0
        %921 = vmatpush1.xpose.msra.mxu0 %v918
        %922 = vmatprep.subr.mxu0 0.0
        %923 = vmatpush1.xpose.msra.mxu0 0.0
        %924 = vmatprep.subr.mxu0 0.0
        %925 = vmatpush1.xpose.msra.mxu0 0.0
        %926 = vmatprep.subr.mxu0 0.0
        %927 = vmatpush1.xpose.msra.mxu0 0.0
        %928 = vmatprep.subr.mxu0 0.0
        %929 = vmatpush1.xpose.msra.mxu0 0.0
        %930 = vmatprep.subr.mxu0 0.0
        %931 = vmatpush1.xpose.msra.mxu0 0.0
        %932 = vmatprep.subr.mxu0 0.0
        %933 = vmatpush1.xpose.msra.mxu0 0.0
        %934 = vmatprep.subr.mxu0 0.0
        %935 = vmatpush1.xpose.msra.mxu0 0.0
        %936 = vmatprep.subr.mxu0 0.0
        %937 = vmatpush1.xpose.msra.mxu0 0.0
        %938 = vmatprep.subr.mxu0 0.0
        %939 = vmatpush1.xpose.msra.mxu0 0.0
        %940 = vmatprep.subr.mxu0 0.0
        %941 = vmatpush1.xpose.msra.mxu0 0.0
        %942 = vmatprep.subr.mxu0 0.0
        %943 = vmatpush1.xpose.msra.mxu0 0.0
        %944 = vmatprep.subr.mxu0 0.0
        %945 = vmatpush1.xpose.msra.mxu0 0.0
        %946 = vmatprep.subr.mxu0 0.0
        %947 = vmatpush1.xpose.msra.mxu0 0.0
        %948 = vmatprep.subr.mxu0 0.0
        %949 = vmatpush1.xpose.msra.mxu0 0.0
        %950 = vmatprep.subr.mxu0 0.0
        %951 = vmatpush1.xpose.msra.mxu0 0.0
        %952 = vmatprep.subr.mxu0 0.0
        %953 = vmatpush1.xpose.msra.mxu0 0.0
        %954 = vmatprep.subr.mxu0 0.0
        %955 = vmatpush1.xpose.msra.mxu0 0.0
        %956 = vmatprep.subr.mxu0 0.0
        %957 = vmatpush1.xpose.msra.mxu0 0.0
        %958 = vmatprep.subr.mxu0 0.0
        %959 = vmatpush1.xpose.msra.mxu0 0.0
        %960 = vmatprep.subr.mxu0 0.0
        %961 = vmatpush1.xpose.msra.mxu0 0.0
        %962 = vmatprep.subr.mxu0 0.0
        %963 = vmatpush1.xpose.msra.mxu0 0.0
        %964 = vmatprep.subr.mxu0 0.0
        %965 = vmatpush1.xpose.msra.mxu0 0.0
        %966 = vmatprep.subr.mxu0 0.0
        %967 = vmatpush1.xpose.msra.mxu0 0.0
        %968 = vmatprep.subr.mxu0 0.0
        %969 = vmatpush1.xpose.msra.mxu0 0.0
        %970 = vmatprep.subr.mxu0 0.0
        %971 = vmatpush1.xpose.msra.mxu0 0.0
        %972 = vmatprep.subr.mxu0 0.0
        %973 = vmatpush1.xpose.msra.mxu0 0.0
        %974 = vmatprep.subr.mxu0 0.0
        %975 = vmatpush1.xpose.msra.mxu0 0.0
        %976 = vmatprep.subr.mxu0 0.0
        %977 = vmatpush1.xpose.msra.mxu0 0.0
        %978 = vmatprep.subr.mxu0 0.0
        %979 = vmatpush1.xpose.msra.mxu0 0.0
        %980 = vmatprep.subr.mxu0 0.0
        %981 = vmatpush1.xpose.msra.mxu0 0.0
        %982 = vmatprep.subr.mxu0 0.0
        %983 = vmatpush1.xpose.msra.mxu0 0.0
        %984 = vmatprep.mubr.f32.mxu0 0.0
        %985 = vmatmul.mubr.f32.gmra.mrb[0].mxu0 %v915
        %v986 = vpop.f32.mrb[0].mxu0
        %v987 = vadd.f32 0.0, %v986
        %v988 = vpop.f32.mrb[0].mxu0
        %989 = vdwg.mxu0
        %v990 = vmul.f32 %v987, 0.35355338
        %vm991 = vcmp.eq.f32.partialorder %v912, 0.0
        %v992 = vsel %vm991, 1, 0
        %v993 = vlaneseq
        %v994 = vshrl.u32 %v993, 7
        %v995 = vsub.s32 0, %v994
        %v996 = vrot.slane %v992, %v995
        %vm997 = vcmp.eq.s32.totalorder %v996, 1
        %v998 = vsel %vm997, -1e+09, %v990
        %v999 = vsel %vm913, %v998, -inf
        %1000 = vmax.xlane.f32.xlu0 %v999
        %v1001 = vpop.xlane.xlu0 %1000
        %v1002 = vsub.f32 %v998, %v1001
        %v1003 = vmul.f32 %v1002, 1.442695
        %v1004 = vpow.pop %v1003
        %v1005 = vsel %vm913, %v1004, 0.0
        %1006 = vadd.xlane.f32.xlu0 %v1005
        %v1007 = vpop.xlane.xlu0 %1006
        %v1008 = vrcp.pop %v1007
        %v1009 = vmul.f32 %v1004, %v1008
        %v1011 = vsel %vm913, %v1009, 0
        %1013 = vmatprep.subr.mxu0 0.0
        %1014 = vmatpush1.msra.mxu0 %v909
        %1015 = vmatprep.subr.mxu0 0.0
        %1016 = vmatpush1.msra.mxu0 0.0
        %1017 = vmatprep.subr.mxu0 0.0
        %1018 = vmatpush1.msra.mxu0 0.0
        %1019 = vmatprep.subr.mxu0 0.0
        %1020 = vmatpush1.msra.mxu0 0.0
        %1021 = vmatprep.subr.mxu0 0.0
        %1022 = vmatpush1.msra.mxu0 0.0
        %1023 = vmatprep.subr.mxu0 0.0
        %1024 = vmatpush1.msra.mxu0 0.0
        %1025 = vmatprep.subr.mxu0 0.0
        %1026 = vmatpush1.msra.mxu0 0.0
        %1027 = vmatprep.subr.mxu0 0.0
        %1028 = vmatpush1.msra.mxu0 0.0
        %1029 = vmatprep.subr.mxu0 0.0
        %1030 = vmatpush1.msra.mxu0 0.0
        %1031 = vmatprep.subr.mxu0 0.0
        %1032 = vmatpush1.msra.mxu0 0.0
        %1033 = vmatprep.subr.mxu0 0.0
        %1034 = vmatpush1.msra.mxu0 0.0
        %1035 = vmatprep.subr.mxu0 0.0
        %1036 = vmatpush1.msra.mxu0 0.0
        %1037 = vmatprep.subr.mxu0 0.0
        %1038 = vmatpush1.msra.mxu0 0.0
        %1039 = vmatprep.subr.mxu0 0.0
        %1040 = vmatpush1.msra.mxu0 0.0
        %1041 = vmatprep.subr.mxu0 0.0
        %1042 = vmatpush1.msra.mxu0 0.0
        %1043 = vmatprep.subr.mxu0 0.0
        %1044 = vmatpush1.msra.mxu0 0.0
        %1045 = vmatprep.subr.mxu0 0.0
        %1046 = vmatpush1.msra.mxu0 0.0
        %1047 = vmatprep.subr.mxu0 0.0
        %1048 = vmatpush1.msra.mxu0 0.0
        %1049 = vmatprep.subr.mxu0 0.0
        %1050 = vmatpush1.msra.mxu0 0.0
        %1051 = vmatprep.subr.mxu0 0.0
        %1052 = vmatpush1.msra.mxu0 0.0
        %1053 = vmatprep.subr.mxu0 0.0
        %1054 = vmatpush1.msra.mxu0 0.0
        %1055 = vmatprep.subr.mxu0 0.0
        %1056 = vmatpush1.msra.mxu0 0.0
        %1057 = vmatprep.subr.mxu0 0.0
        %1058 = vmatpush1.msra.mxu0 0.0
        %1059 = vmatprep.subr.mxu0 0.0
        %1060 = vmatpush1.msra.mxu0 0.0
        %1061 = vmatprep.subr.mxu0 0.0
        %1062 = vmatpush1.msra.mxu0 0.0
        %1063 = vmatprep.subr.mxu0 0.0
        %1064 = vmatpush1.msra.mxu0 0.0
        %1065 = vmatprep.subr.mxu0 0.0
        %1066 = vmatpush1.msra.mxu0 0.0
        %1067 = vmatprep.subr.mxu0 0.0
        %1068 = vmatpush1.msra.mxu0 0.0
        %1069 = vmatprep.subr.mxu0 0.0
        %1070 = vmatpush1.msra.mxu0 0.0
        %1071 = vmatprep.subr.mxu0 0.0
        %1072 = vmatpush1.msra.mxu0 0.0
        %1073 = vmatprep.subr.mxu0 0.0
        %1074 = vmatpush1.msra.mxu0 0.0
        %1075 = vmatprep.subr.mxu0 0.0
        %1076 = vmatpush1.msra.mxu0 0.0
        %1077 = vmatprep.mubr.f32.mxu0 0.0
        %1078 = vmatmul.mubr.f32.gmra.mrb[0].mxu0 %v1011
        %v1079 = vpop.f32.mrb[0].mxu0
        %v1080 = vadd.f32 0.0, %v1079
        %v1081 = vpop.f32.mrb[0].mxu0
        %1082 = vdwg.mxu0
        %1083 = vrot.lane.b32.xlu0 %v747, 120
        %v1084 = vpop.permute.xlu0 %1083
        %1085 = vrot.lane.b32.xlu0 %v828, 120
        %v1086 = vpop.permute.xlu0 %1085
        %v1087 = vsel %vm913, %v1084, 0
        %v1089 = vsel %vm913, %v1086, 0
        %1091 = vmatprep.subr.mxu0 0.0
        %1092 = vmatpush1.xpose.msra.mxu0 %v1089
        %1093 = vmatprep.subr.mxu0 0.0
        %1094 = vmatpush1.xpose.msra.mxu0 0.0
        %1095 = vmatprep.subr.mxu0 0.0
        %1096 = vmatpush1.xpose.msra.mxu0 0.0
        %1097 = vmatprep.subr.mxu0 0.0
        %1098 = vmatpush1.xpose.msra.mxu0 0.0
        %1099 = vmatprep.subr.mxu0 0.0
        %1100 = vmatpush1.xpose.msra.mxu0 0.0
        %1101 = vmatprep.subr.mxu0 0.0
        %1102 = vmatpush1.xpose.msra.mxu0 0.0
        %1103 = vmatprep.subr.mxu0 0.0
        %1104 = vmatpush1.xpose.msra.mxu0 0.0
        %1105 = vmatprep.subr.mxu0 0.0
        %1106 = vmatpush1.xpose.msra.mxu0 0.0
        %1107 = vmatprep.subr.mxu0 0.0
        %1108 = vmatpush1.xpose.msra.mxu0 0.0
        %1109 = vmatprep.subr.mxu0 0.0
        %1110 = vmatpush1.xpose.msra.mxu0 0.0
        %1111 = vmatprep.subr.mxu0 0.0
        %1112 = vmatpush1.xpose.msra.mxu0 0.0
        %1113 = vmatprep.subr.mxu0 0.0
        %1114 = vmatpush1.xpose.msra.mxu0 0.0
        %1115 = vmatprep.subr.mxu0 0.0
        %1116 = vmatpush1.xpose.msra.mxu0 0.0
        %1117 = vmatprep.subr.mxu0 0.0
        %1118 = vmatpush1.xpose.msra.mxu0 0.0
        %1119 = vmatprep.subr.mxu0 0.0
        %1120 = vmatpush1.xpose.msra.mxu0 0.0
        %1121 = vmatprep.subr.mxu0 0.0
        %1122 = vmatpush1.xpose.msra.mxu0 0.0
        %1123 = vmatprep.subr.mxu0 0.0
        %1124 = vmatpush1.xpose.msra.mxu0 0.0
        %1125 = vmatprep.subr.mxu0 0.0
        %1126 = vmatpush1.xpose.msra.mxu0 0.0
        %1127 = vmatprep.subr.mxu0 0.0
        %1128 = vmatpush1.xpose.msra.mxu0 0.0
        %1129 = vmatprep.subr.mxu0 0.0
        %1130 = vmatpush1.xpose.msra.mxu0 0.0
        %1131 = vmatprep.subr.mxu0 0.0
        %1132 = vmatpush1.xpose.msra.mxu0 0.0
        %1133 = vmatprep.subr.mxu0 0.0
        %1134 = vmatpush1.xpose.msra.mxu0 0.0
        %1135 = vmatprep.subr.mxu0 0.0
        %1136 = vmatpush1.xpose.msra.mxu0 0.0
        %1137 = vmatprep.subr.mxu0 0.0
        %1138 = vmatpush1.xpose.msra.mxu0 0.0
        %1139 = vmatprep.subr.mxu0 0.0
        %1140 = vmatpush1.xpose.msra.mxu0 0.0
        %1141 = vmatprep.subr.mxu0 0.0
        %1142 = vmatpush1.xpose.msra.mxu0 0.0
        %1143 = vmatprep.subr.mxu0 0.0
        %1144 = vmatpush1.xpose.msra.mxu0 0.0
        %1145 = vmatprep.subr.mxu0 0.0
        %1146 = vmatpush1.xpose.msra.mxu0 0.0
        %1147 = vmatprep.subr.mxu0 0.0
        %1148 = vmatpush1.xpose.msra.mxu0 0.0
        %1149 = vmatprep.subr.mxu0 0.0
        %1150 = vmatpush1.xpose.msra.mxu0 0.0
        %1151 = vmatprep.subr.mxu0 0.0
        %1152 = vmatpush1.xpose.msra.mxu0 0.0
        %1153 = vmatprep.subr.mxu0 0.0
        %1154 = vmatpush1.xpose.msra.mxu0 0.0
        %1155 = vmatprep.mubr.f32.mxu0 0.0
        %1156 = vmatmul.mubr.f32.gmra.mrb[0].mxu0 %v1087
        %v1157 = vpop.f32.mrb[0].mxu0
        %v1158 = vadd.f32 0.0, %v1157
        %v1159 = vpop.f32.mrb[0].mxu0
        %1160 = vdwg.mxu0
        %v1161 = vmul.f32 %v1158, 0.35355338
        %v1162 = vsel %vm997, -1e+09, %v1161
        %v1163 = vsel %vm913, %v1162, -inf
        %1164 = vmax.xlane.f32.xlu0 %v1163
        %v1165 = vpop.xlane.xlu0 %1164
        %v1166 = vsub.f32 %v1162, %v1165
        %v1167 = vmul.f32 %v1166, 1.442695
        %v1168 = vpow.pop %v1167
        %v1169 = vsel %vm913, %v1168, 0.0
        %1170 = vadd.xlane.f32.xlu0 %v1169
        %v1171 = vpop.xlane.xlu0 %1170
        %v1172 = vrcp.pop %v1171
        %v1173 = vmul.f32 %v1168, %v1172
        %1175 = vrot.lane.b32.xlu0 %v909, 120
        %v1176 = vpop.permute.xlu0 %1175
        %v1179 = vsel %vm913, %v1173, 0
        %1181 = vmatprep.subr.mxu0 0.0
        %1182 = vmatpush1.msra.mxu0 %v1176
        %1183 = vmatprep.subr.mxu0 0.0
        %1184 = vmatpush1.msra.mxu0 0.0
        %1185 = vmatprep.subr.mxu0 0.0
        %1186 = vmatpush1.msra.mxu0 0.0
        %1187 = vmatprep.subr.mxu0 0.0
        %1188 = vmatpush1.msra.mxu0 0.0
        %1189 = vmatprep.subr.mxu0 0.0
        %1190 = vmatpush1.msra.mxu0 0.0
        %1191 = vmatprep.subr.mxu0 0.0
        %1192 = vmatpush1.msra.mxu0 0.0
        %1193 = vmatprep.subr.mxu0 0.0
        %1194 = vmatpush1.msra.mxu0 0.0
        %1195 = vmatprep.subr.mxu0 0.0
        %1196 = vmatpush1.msra.mxu0 0.0
        %1197 = vmatprep.subr.mxu0 0.0
        %1198 = vmatpush1.msra.mxu0 0.0
        %1199 = vmatprep.subr.mxu0 0.0
        %1200 = vmatpush1.msra.mxu0 0.0
        %1201 = vmatprep.subr.mxu0 0.0
        %1202 = vmatpush1.msra.mxu0 0.0
        %1203 = vmatprep.subr.mxu0 0.0
        %1204 = vmatpush1.msra.mxu0 0.0
        %1205 = vmatprep.subr.mxu0 0.0
        %1206 = vmatpush1.msra.mxu0 0.0
        %1207 = vmatprep.subr.mxu0 0.0
        %1208 = vmatpush1.msra.mxu0 0.0
        %1209 = vmatprep.subr.mxu0 0.0
        %1210 = vmatpush1.msra.mxu0 0.0
        %1211 = vmatprep.subr.mxu0 0.0
        %1212 = vmatpush1.msra.mxu0 0.0
        %1213 = vmatprep.subr.mxu0 0.0
        %1214 = vmatpush1.msra.mxu0 0.0
        %1215 = vmatprep.subr.mxu0 0.0
        %1216 = vmatpush1.msra.mxu0 0.0
        %1217 = vmatprep.subr.mxu0 0.0
        %1218 = vmatpush1.msra.mxu0 0.0
        %1219 = vmatprep.subr.mxu0 0.0
        %1220 = vmatpush1.msra.mxu0 0.0
        %1221 = vmatprep.subr.mxu0 0.0
        %1222 = vmatpush1.msra.mxu0 0.0
        %1223 = vmatprep.subr.mxu0 0.0
        %1224 = vmatpush1.msra.mxu0 0.0
        %1225 = vmatprep.subr.mxu0 0.0
        %1226 = vmatpush1.msra.mxu0 0.0
        %1227 = vmatprep.subr.mxu0 0.0
        %1228 = vmatpush1.msra.mxu0 0.0
        %1229 = vmatprep.subr.mxu0 0.0
        %1230 = vmatpush1.msra.mxu0 0.0
        %1231 = vmatprep.subr.mxu0 0.0
        %1232 = vmatpush1.msra.mxu0 0.0
        %1233 = vmatprep.subr.mxu0 0.0
        %1234 = vmatpush1.msra.mxu0 0.0
        %1235 = vmatprep.subr.mxu0 0.0
        %1236 = vmatpush1.msra.mxu0 0.0
        %1237 = vmatprep.subr.mxu0 0.0
        %1238 = vmatpush1.msra.mxu0 0.0
        %1239 = vmatprep.subr.mxu0 0.0
        %1240 = vmatpush1.msra.mxu0 0.0
        %1241 = vmatprep.subr.mxu0 0.0
        %1242 = vmatpush1.msra.mxu0 0.0
        %1243 = vmatprep.subr.mxu0 0.0
        %1244 = vmatpush1.msra.mxu0 0.0
        %1245 = vmatprep.mubr.f32.mxu0 0.0
        %1246 = vmatmul.mubr.f32.gmra.mrb[0].mxu0 %v1179
        %v1247 = vpop.f32.mrb[0].mxu0
        %v1248 = vadd.f32 0.0, %v1247
        %v1249 = vpop.f32.mrb[0].mxu0
        %1250 = vdwg.mxu0
        %1251 = vrot.lane.b32.xlu0 %v747, 112
        %v1252 = vpop.permute.xlu0 %1251
        %1253 = vrot.lane.b32.xlu0 %v828, 112
        %v1254 = vpop.permute.xlu0 %1253
        %v1255 = vsel %vm913, %v1252, 0
        %v1257 = vsel %vm913, %v1254, 0
        %1259 = vmatprep.subr.mxu0 0.0
        %1260 = vmatpush1.xpose.msra.mxu0 %v1257
        %1261 = vmatprep.subr.mxu0 0.0
        %1262 = vmatpush1.xpose.msra.mxu0 0.0
        %1263 = vmatprep.subr.mxu0 0.0
        %1264 = vmatpush1.xpose.msra.mxu0 0.0
        %1265 = vmatprep.subr.mxu0 0.0
        %1266 = vmatpush1.xpose.msra.mxu0 0.0
        %1267 = vmatprep.subr.mxu0 0.0
        %1268 = vmatpush1.xpose.msra.mxu0 0.0
        %1269 = vmatprep.subr.mxu0 0.0
        %1270 = vmatpush1.xpose.msra.mxu0 0.0
        %1271 = vmatprep.subr.mxu0 0.0
        %1272 = vmatpush1.xpose.msra.mxu0 0.0
        %1273 = vmatprep.subr.mxu0 0.0
        %1274 = vmatpush1.xpose.msra.mxu0 0.0
        %1275 = vmatprep.subr.mxu0 0.0
        %1276 = vmatpush1.xpose.msra.mxu0 0.0
        %1277 = vmatprep.subr.mxu0 0.0
        %1278 = vmatpush1.xpose.msra.mxu0 0.0
        %1279 = vmatprep.subr.mxu0 0.0
        %1280 = vmatpush1.xpose.msra.mxu0 0.0
        %1281 = vmatprep.subr.mxu0 0.0
        %1282 = vmatpush1.xpose.msra.mxu0 0.0
        %1283 = vmatprep.subr.mxu0 0.0
        %1284 = vmatpush1.xpose.msra.mxu0 0.0
        %1285 = vmatprep.subr.mxu0 0.0
        %1286 = vmatpush1.xpose.msra.mxu0 0.0
        %1287 = vmatprep.subr.mxu0 0.0
        %1288 = vmatpush1.xpose.msra.mxu0 0.0
        %1289 = vmatprep.subr.mxu0 0.0
        %1290 = vmatpush1.xpose.msra.mxu0 0.0
        %1291 = vmatprep.subr.mxu0 0.0
        %1292 = vmatpush1.xpose.msra.mxu0 0.0
        %1293 = vmatprep.subr.mxu0 0.0
        %1294 = vmatpush1.xpose.msra.mxu0 0.0
        %1295 = vmatprep.subr.mxu0 0.0
        %1296 = vmatpush1.xpose.msra.mxu0 0.0
        %1297 = vmatprep.subr.mxu0 0.0
        %1298 = vmatpush1.xpose.msra.mxu0 0.0
        %1299 = vmatprep.subr.mxu0 0.0
        %1300 = vmatpush1.xpose.msra.mxu0 0.0
        %1301 = vmatprep.subr.mxu0 0.0
        %1302 = vmatpush1.xpose.msra.mxu0 0.0
        %1303 = vmatprep.subr.mxu0 0.0
        %1304 = vmatpush1.xpose.msra.mxu0 0.0
        %1305 = vmatprep.subr.mxu0 0.0
        %1306 = vmatpush1.xpose.msra.mxu0 0.0
        %1307 = vmatprep.subr.mxu0 0.0
        %1308 = vmatpush1.xpose.msra.mxu0 0.0
        %1309 = vmatprep.subr.mxu0 0.0
        %1310 = vmatpush1.xpose.msra.mxu0 0.0
        %1311 = vmatprep.subr.mxu0 0.0
        %1312 = vmatpush1.xpose.msra.mxu0 0.0
        %1313 = vmatprep.subr.mxu0 0.0
        %1314 = vmatpush1.xpose.msra.mxu0 0.0
        %1315 = vmatprep.subr.mxu0 0.0
        %1316 = vmatpush1.xpose.msra.mxu0 0.0
        %1317 = vmatprep.subr.mxu0 0.0
        %1318 = vmatpush1.xpose.msra.mxu0 0.0
        %1319 = vmatprep.subr.mxu0 0.0
        %1320 = vmatpush1.xpose.msra.mxu0 0.0
        %1321 = vmatprep.subr.mxu0 0.0
        %1322 = vmatpush1.xpose.msra.mxu0 0.0
        %1323 = vmatprep.mubr.f32.mxu0 0.0
        %1324 = vmatmul.mubr.f32.gmra.mrb[0].mxu0 %v1255
        %v1325 = vpop.f32.mrb[0].mxu0
        %v1326 = vadd.f32 0.0, %v1325
        %v1327 = vpop.f32.mrb[0].mxu0
        %1328 = vdwg.mxu0
        %v1329 = vmul.f32 %v1326, 0.35355338
        %v1330 = vsel %vm997, -1e+09, %v1329
        %v1331 = vsel %vm913, %v1330, -inf
        %1332 = vmax.xlane.f32.xlu0 %v1331
        %v1333 = vpop.xlane.xlu0 %1332
        %v1334 = vsub.f32 %v1330, %v1333
        %v1335 = vmul.f32 %v1334, 1.442695
        %v1336 = vpow.pop %v1335
        %v1337 = vsel %vm913, %v1336, 0.0
        %1338 = vadd.xlane.f32.xlu0 %v1337
        %v1339 = vpop.xlane.xlu0 %1338
        %v1340 = vrcp.pop %v1339
        %v1341 = vmul.f32 %v1336, %v1340
        %1342 = vrot.lane.b32.xlu0 %v909, 112
        %v1343 = vpop.permute.xlu0 %1342
        %v1346 = vsel %vm913, %v1341, 0
        %1348 = vmatprep.subr.mxu0 0.0
        %1349 = vmatpush1.msra.mxu0 %v1343
        %1350 = vmatprep.subr.mxu0 0.0
        %1351 = vmatpush1.msra.mxu0 0.0
        %1352 = vmatprep.subr.mxu0 0.0
        %1353 = vmatpush1.msra.mxu0 0.0
        %1354 = vmatprep.subr.mxu0 0.0
        %1355 = vmatpush1.msra.mxu0 0.0
        %1356 = vmatprep.subr.mxu0 0.0
        %1357 = vmatpush1.msra.mxu0 0.0
        %1358 = vmatprep.subr.mxu0 0.0
        %1359 = vmatpush1.msra.mxu0 0.0
        %1360 = vmatprep.subr.mxu0 0.0
        %1361 = vmatpush1.msra.mxu0 0.0
        %1362 = vmatprep.subr.mxu0 0.0
        %1363 = vmatpush1.msra.mxu0 0.0
        %1364 = vmatprep.subr.mxu0 0.0
        %1365 = vmatpush1.msra.mxu0 0.0
        %1366 = vmatprep.subr.mxu0 0.0
        %1367 = vmatpush1.msra.mxu0 0.0
        %1368 = vmatprep.subr.mxu0 0.0
        %1369 = vmatpush1.msra.mxu0 0.0
        %1370 = vmatprep.subr.mxu0 0.0
        %1371 = vmatpush1.msra.mxu0 0.0
        %1372 = vmatprep.subr.mxu0 0.0
        %1373 = vmatpush1.msra.mxu0 0.0
        %1374 = vmatprep.subr.mxu0 0.0
        %1375 = vmatpush1.msra.mxu0 0.0
        %1376 = vmatprep.subr.mxu0 0.0
        %1377 = vmatpush1.msra.mxu0 0.0
        %1378 = vmatprep.subr.mxu0 0.0
        %1379 = vmatpush1.msra.mxu0 0.0
        %1380 = vmatprep.subr.mxu0 0.0
        %1381 = vmatpush1.msra.mxu0 0.0
        %1382 = vmatprep.subr.mxu0 0.0
        %1383 = vmatpush1.msra.mxu0 0.0
        %1384 = vmatprep.subr.mxu0 0.0
        %1385 = vmatpush1.msra.mxu0 0.0
        %1386 = vmatprep.subr.mxu0 0.0
        %1387 = vmatpush1.msra.mxu0 0.0
        %1388 = vmatprep.subr.mxu0 0.0
        %1389 = vmatpush1.msra.mxu0 0.0
        %1390 = vmatprep.subr.mxu0 0.0
        %1391 = vmatpush1.msra.mxu0 0.0
        %1392 = vmatprep.subr.mxu0 0.0
        %1393 = vmatpush1.msra.mxu0 0.0
        %1394 = vmatprep.subr.mxu0 0.0
        %1395 = vmatpush1.msra.mxu0 0.0
        %1396 = vmatprep.subr.mxu0 0.0
        %1397 = vmatpush1.msra.mxu0 0.0
        %1398 = vmatprep.subr.mxu0 0.0
        %1399 = vmatpush1.msra.mxu0 0.0
        %1400 = vmatprep.subr.mxu0 0.0
        %1401 = vmatpush1.msra.mxu0 0.0
        %1402 = vmatprep.subr.mxu0 0.0
        %1403 = vmatpush1.msra.mxu0 0.0
        %1404 = vmatprep.subr.mxu0 0.0
        %1405 = vmatpush1.msra.mxu0 0.0
        %1406 = vmatprep.subr.mxu0 0.0
        %1407 = vmatpush1.msra.mxu0 0.0
        %1408 = vmatprep.subr.mxu0 0.0
        %1409 = vmatpush1.msra.mxu0 0.0
        %1410 = vmatprep.subr.mxu0 0.0
        %1411 = vmatpush1.msra.mxu0 0.0
        %1412 = vmatprep.mubr.f32.mxu0 0.0
        %1413 = vmatmul.mubr.f32.gmra.mrb[0].mxu0 %v1346
        %v1414 = vpop.f32.mrb[0].mxu0
        %v1415 = vadd.f32 0.0, %v1414
        %v1416 = vpop.f32.mrb[0].mxu0
        %1417 = vdwg.mxu0
        %1418 = vrot.lane.b32.xlu0 %v747, 104
        %v1419 = vpop.permute.xlu0 %1418
        %1420 = vrot.lane.b32.xlu0 %v828, 104
        %v1421 = vpop.permute.xlu0 %1420
        %v1422 = vsel %vm913, %v1419, 0
        %v1424 = vsel %vm913, %v1421, 0
        %1426 = vmatprep.subr.mxu0 0.0
        %1427 = vmatpush1.xpose.msra.mxu0 %v1424
        %1428 = vmatprep.subr.mxu0 0.0
        %1429 = vmatpush1.xpose.msra.mxu0 0.0
        %1430 = vmatprep.subr.mxu0 0.0
        %1431 = vmatpush1.xpose.msra.mxu0 0.0
        %1432 = vmatprep.subr.mxu0 0.0
        %1433 = vmatpush1.xpose.msra.mxu0 0.0
        %1434 = vmatprep.subr.mxu0 0.0
        %1435 = vmatpush1.xpose.msra.mxu0 0.0
        %1436 = vmatprep.subr.mxu0 0.0
        %1437 = vmatpush1.xpose.msra.mxu0 0.0
        %1438 = vmatprep.subr.mxu0 0.0
        %1439 = vmatpush1.xpose.msra.mxu0 0.0
        %1440 = vmatprep.subr.mxu0 0.0
        %1441 = vmatpush1.xpose.msra.mxu0 0.0
        %1442 = vmatprep.subr.mxu0 0.0
        %1443 = vmatpush1.xpose.msra.mxu0 0.0
        %1444 = vmatprep.subr.mxu0 0.0
        %1445 = vmatpush1.xpose.msra.mxu0 0.0
        %1446 = vmatprep.subr.mxu0 0.0
        %1447 = vmatpush1.xpose.msra.mxu0 0.0
        %1448 = vmatprep.subr.mxu0 0.0
        %1449 = vmatpush1.xpose.msra.mxu0 0.0
        %1450 = vmatprep.subr.mxu0 0.0
        %1451 = vmatpush1.xpose.msra.mxu0 0.0
        %1452 = vmatprep.subr.mxu0 0.0
        %1453 = vmatpush1.xpose.msra.mxu0 0.0
        %1454 = vmatprep.subr.mxu0 0.0
        %1455 = vmatpush1.xpose.msra.mxu0 0.0
        %1456 = vmatprep.subr.mxu0 0.0
        %1457 = vmatpush1.xpose.msra.mxu0 0.0
        %1458 = vmatprep.subr.mxu0 0.0
        %1459 = vmatpush1.xpose.msra.mxu0 0.0
        %1460 = vmatprep.subr.mxu0 0.0
        %1461 = vmatpush1.xpose.msra.mxu0 0.0
        %1462 = vmatprep.subr.mxu0 0.0
        %1463 = vmatpush1.xpose.msra.mxu0 0.0
        %1464 = vmatprep.subr.mxu0 0.0
        %1465 = vmatpush1.xpose.msra.mxu0 0.0
        %1466 = vmatprep.subr.mxu0 0.0
        %1467 = vmatpush1.xpose.msra.mxu0 0.0
        %1468 = vmatprep.subr.mxu0 0.0
        %1469 = vmatpush1.xpose.msra.mxu0 0.0
        %1470 = vmatprep.subr.mxu0 0.0
        %1471 = vmatpush1.xpose.msra.mxu0 0.0
        %1472 = vmatprep.subr.mxu0 0.0
        %1473 = vmatpush1.xpose.msra.mxu0 0.0
        %1474 = vmatprep.subr.mxu0 0.0
        %1475 = vmatpush1.xpose.msra.mxu0 0.0
        %1476 = vmatprep.subr.mxu0 0.0
        %1477 = vmatpush1.xpose.msra.mxu0 0.0
        %1478 = vmatprep.subr.mxu0 0.0
        %1479 = vmatpush1.xpose.msra.mxu0 0.0
        %1480 = vmatprep.subr.mxu0 0.0
        %1481 = vmatpush1.xpose.msra.mxu0 0.0
        %1482 = vmatprep.subr.mxu0 0.0
        %1483 = vmatpush1.xpose.msra.mxu0 0.0
        %1484 = vmatprep.subr.mxu0 0.0
        %1485 = vmatpush1.xpose.msra.mxu0 0.0
        %1486 = vmatprep.subr.mxu0 0.0
        %1487 = vmatpush1.xpose.msra.mxu0 0.0
        %1488 = vmatprep.subr.mxu0 0.0
        %1489 = vmatpush1.xpose.msra.mxu0 0.0
        %1490 = vmatprep.mubr.f32.mxu0 0.0
        %1491 = vmatmul.mubr.f32.gmra.mrb[0].mxu0 %v1422
        %v1492 = vpop.f32.mrb[0].mxu0
        %v1493 = vadd.f32 0.0, %v1492
        %v1494 = vpop.f32.mrb[0].mxu0
        %1495 = vdwg.mxu0
        %v1496 = vmul.f32 %v1493, 0.35355338
        %v1497 = vsel %vm997, -1e+09, %v1496
        %v1498 = vsel %vm913, %v1497, -inf
        %1499 = vmax.xlane.f32.xlu0 %v1498
        %v1500 = vpop.xlane.xlu0 %1499
        %v1501 = vsub.f32 %v1497, %v1500
        %v1502 = vmul.f32 %v1501, 1.442695
        %v1503 = vpow.pop %v1502
        %v1504 = vsel %vm913, %v1503, 0.0
        %1505 = vadd.xlane.f32.xlu0 %v1504
        %v1506 = vpop.xlane.xlu0 %1505
        %v1507 = vrcp.pop %v1506
        %v1508 = vmul.f32 %v1503, %v1507
        %1509 = vrot.lane.b32.xlu0 %v909, 104
        %v1510 = vpop.permute.xlu0 %1509
        %v1513 = vsel %vm913, %v1508, 0
        %1515 = vmatprep.subr.mxu0 0.0
        %1516 = vmatpush1.msra.mxu0 %v1510
        %1517 = vmatprep.subr.mxu0 0.0
        %1518 = vmatpush1.msra.mxu0 0.0
        %1519 = vmatprep.subr.mxu0 0.0
        %1520 = vmatpush1.msra.mxu0 0.0
        %1521 = vmatprep.subr.mxu0 0.0
        %1522 = vmatpush1.msra.mxu0 0.0
        %1523 = vmatprep.subr.mxu0 0.0
        %1524 = vmatpush1.msra.mxu0 0.0
        %1525 = vmatprep.subr.mxu0 0.0
        %1526 = vmatpush1.msra.mxu0 0.0
        %1527 = vmatprep.subr.mxu0 0.0
        %1528 = vmatpush1.msra.mxu0 0.0
        %1529 = vmatprep.subr.mxu0 0.0
        %1530 = vmatpush1.msra.mxu0 0.0
        %1531 = vmatprep.subr.mxu0 0.0
        %1532 = vmatpush1.msra.mxu0 0.0
        %1533 = vmatprep.subr.mxu0 0.0
        %1534 = vmatpush1.msra.mxu0 0.0
        %1535 = vmatprep.subr.mxu0 0.0
        %1536 = vmatpush1.msra.mxu0 0.0
        %1537 = vmatprep.subr.mxu0 0.0
        %1538 = vmatpush1.msra.mxu0 0.0
        %1539 = vmatprep.subr.mxu0 0.0
        %1540 = vmatpush1.msra.mxu0 0.0
        %1541 = vmatprep.subr.mxu0 0.0
        %1542 = vmatpush1.msra.mxu0 0.0
        %1543 = vmatprep.subr.mxu0 0.0
        %1544 = vmatpush1.msra.mxu0 0.0
        %1545 = vmatprep.subr.mxu0 0.0
        %1546 = vmatpush1.msra.mxu0 0.0
        %1547 = vmatprep.subr.mxu0 0.0
        %1548 = vmatpush1.msra.mxu0 0.0
        %1549 = vmatprep.subr.mxu0 0.0
        %1550 = vmatpush1.msra.mxu0 0.0
        %1551 = vmatprep.subr.mxu0 0.0
        %1552 = vmatpush1.msra.mxu0 0.0
        %1553 = vmatprep.subr.mxu0 0.0
        %1554 = vmatpush1.msra.mxu0 0.0
        %1555 = vmatprep.subr.mxu0 0.0
        %1556 = vmatpush1.msra.mxu0 0.0
        %1557 = vmatprep.subr.mxu0 0.0
        %1558 = vmatpush1.msra.mxu0 0.0
        %1559 = vmatprep.subr.mxu0 0.0
        %1560 = vmatpush1.msra.mxu0 0.0
        %1561 = vmatprep.subr.mxu0 0.0
        %1562 = vmatpush1.msra.mxu0 0.0
        %1563 = vmatprep.subr.mxu0 0.0
        %1564 = vmatpush1.msra.mxu0 0.0
        %1565 = vmatprep.subr.mxu0 0.0
        %1566 = vmatpush1.msra.mxu0 0.0
        %1567 = vmatprep.subr.mxu0 0.0
        %1568 = vmatpush1.msra.mxu0 0.0
        %1569 = vmatprep.subr.mxu0 0.0
        %1570 = vmatpush1.msra.mxu0 0.0
        %1571 = vmatprep.subr.mxu0 0.0
        %1572 = vmatpush1.msra.mxu0 0.0
        %1573 = vmatprep.subr.mxu0 0.0
        %1574 = vmatpush1.msra.mxu0 0.0
        %1575 = vmatprep.subr.mxu0 0.0
        %1576 = vmatpush1.msra.mxu0 0.0
        %1577 = vmatprep.subr.mxu0 0.0
        %1578 = vmatpush1.msra.mxu0 0.0
        %1579 = vmatprep.mubr.f32.mxu0 0.0
        %1580 = vmatmul.mubr.f32.gmra.mrb[0].mxu0 %v1513
        %v1581 = vpop.f32.mrb[0].mxu0
        %v1582 = vadd.f32 0.0, %v1581
        %v1583 = vpop.f32.mrb[0].mxu0
        %1584 = vdwg.mxu0
        %1586 = vrot.lane.b32.xlu0 %v1248, 8
        %v1587 = vpop.permute.xlu0 %1586
        %1590 = vrot.lane.b32.xlu0 %v1415, 16
        %v1591 = vpop.permute.xlu0 %1590
        %1594 = vrot.lane.b32.xlu0 %v1582, 24
        %v1595 = vpop.permute.xlu0 %1594
        %v1597 = vsel %vm913, %v1080, %v1587
        %vm1598 = vcmask 130048
        %v1599 = vsel %vm1598, %v1597, %v1591
        %vm1600 = vcmask 195584
        %v1601 = vsel %vm1600, %v1599, %v1595
        %v1602 = vld [vmem:[#allocation5] sm:$0xff]
        %v1603 = vld [vmem:[#allocation5 + $0x8] sm:$0xff]
        %v1604 = vld [vmem:[#allocation5 + $0x10] sm:$0xff]
        %v1605 = vld [vmem:[#allocation5 + $0x18] sm:$0xff]
        %v1606 = vld [vmem:[%s11] sm:$0x1]
        %v1608 = vlaneseq
        %v1609 = vshrl.u32 %v1608, 7
        %v1610 = vsub.s32 0, %v1609
        %v1611 = vrot.slane %v1606, %v1610
        %v1614 = vsel %vm637, %v1601, 0
        %1616 = vmatprep.subr.mxu0 0.0
        %1617 = vmatpush1.msra.mxu0 %v1602
        %1618 = vmatprep.subr.mxu0 0.0
        %1619 = vmatpush1.msra.mxu0 %v1603
        %1620 = vmatprep.subr.mxu0 0.0
        %1621 = vmatpush1.msra.mxu0 %v1604
        %1622 = vmatprep.subr.mxu0 0.0
        %1623 = vmatpush1.msra.mxu0 %v1605
        %1624 = vmatprep.subr.mxu0 0.0
        %1625 = vmatpush1.msra.mxu0 0.0
        %1626 = vmatprep.subr.mxu0 0.0
        %1627 = vmatpush1.msra.mxu0 0.0
        %1628 = vmatprep.subr.mxu0 0.0
        %1629 = vmatpush1.msra.mxu0 0.0
        %1630 = vmatprep.subr.mxu0 0.0
        %1631 = vmatpush1.msra.mxu0 0.0
        %1632 = vmatprep.subr.mxu0 0.0
        %1633 = vmatpush1.msra.mxu0 0.0
        %1634 = vmatprep.subr.mxu0 0.0
        %1635 = vmatpush1.msra.mxu0 0.0
        %1636 = vmatprep.subr.mxu0 0.0
        %1637 = vmatpush1.msra.mxu0 0.0
        %1638 = vmatprep.subr.mxu0 0.0
        %1639 = vmatpush1.msra.mxu0 0.0
        %1640 = vmatprep.subr.mxu0 0.0
        %1641 = vmatpush1.msra.mxu0 0.0
        %1642 = vmatprep.subr.mxu0 0.0
        %1643 = vmatpush1.msra.mxu0 0.0
        %1644 = vmatprep.subr.mxu0 0.0
        %1645 = vmatpush1.msra.mxu0 0.0
        %1646 = vmatprep.subr.mxu0 0.0
        %1647 = vmatpush1.msra.mxu0 0.0
        %1648 = vmatprep.subr.mxu0 0.0
        %1649 = vmatpush1.msra.mxu0 0.0
        %1650 = vmatprep.subr.mxu0 0.0
        %1651 = vmatpush1.msra.mxu0 0.0
        %1652 = vmatprep.subr.mxu0 0.0
        %1653 = vmatpush1.msra.mxu0 0.0
        %1654 = vmatprep.subr.mxu0 0.0
        %1655 = vmatpush1.msra.mxu0 0.0
        %1656 = vmatprep.subr.mxu0 0.0
        %1657 = vmatpush1.msra.mxu0 0.0
        %1658 = vmatprep.subr.mxu0 0.0
        %1659 = vmatpush1.msra.mxu0 0.0
        %1660 = vmatprep.subr.mxu0 0.0
        %1661 = vmatpush1.msra.mxu0 0.0
        %1662 = vmatprep.subr.mxu0 0.0
        %1663 = vmatpush1.msra.mxu0 0.0
        %1664 = vmatprep.subr.mxu0 0.0
        %1665 = vmatpush1.msra.mxu0 0.0
        %1666 = vmatprep.subr.mxu0 0.0
        %1667 = vmatpush1.msra.mxu0 0.0
        %1668 = vmatprep.subr.mxu0 0.0
        %1669 = vmatpush1.msra.mxu0 0.0
        %1670 = vmatprep.subr.mxu0 0.0
        %1671 = vmatpush1.msra.mxu0 0.0
        %1672 = vmatprep.subr.mxu0 0.0
        %1673 = vmatpush1.msra.mxu0 0.0
        %1674 = vmatprep.subr.mxu0 0.0
        %1675 = vmatpush1.msra.mxu0 0.0
        %1676 = vmatprep.subr.mxu0 0.0
        %1677 = vmatpush1.msra.mxu0 0.0
        %1678 = vmatprep.subr.mxu0 0.0
        %1679 = vmatpush1.msra.mxu0 0.0
        %1680 = vmatprep.mubr.f32.mxu0 0.0
        %1681 = vmatmul.mubr.f32.gmra.mrb[0].mxu0 %v1614
        %v1682 = vpop.f32.mrb[0].mxu0
        %v1683 = vadd.f32 %v1611, %v1682
        %v1684 = vpop.f32.mrb[0].mxu0
        %1685 = vdwg.mxu0
        %v1686 = vadd.f32 %v634, %v1683
        %v1687 = vld [vmem:[%s12] sm:$0x1]
        %v1688 = vld [vmem:[%s13] sm:$0x1]
        %v1689 = vsel %vm637, %v1686, 0.0
        %1690 = vadd.xlane.f32.xlu0 %v1689
        %v1691 = vpop.xlane.xlu0 %1690
        %v1692 = vmul.f32 %v1691, %v641
        %v1693 = vsub.f32 %v1686, %v1692
        %v1694 = vmul.f32 %v1693, %v1693
        %v1695 = vsel %vm637, %v1694, 0.0
        %1696 = vadd.xlane.f32.xlu0 %v1695
        %v1697 = vpop.xlane.xlu0 %1696
        %v1698 = vmul.f32 %v1697, %v641
        %v1699 = vadd.f32 %v1698, 1e-05
        %v1700 = vrsqrt.pop %v1699
        %v1701 = vmul.f32 %v1693, %v1700
        %v1703 = vlaneseq
        %v1704 = vshrl.u32 %v1703, 7
        %v1705 = vsub.s32 0, %v1704
        %v1706 = vrot.slane %v1687, %v1705
        %v1708 = vmul.f32 %v1701, %v1706
        %v1710 = vlaneseq
        %v1711 = vshrl.u32 %v1710, 7
        %v1712 = vsub.s32 0, %v1711
        %v1713 = vrot.slane %v1688, %v1712
        %v1715 = vadd.f32 %v1708, %v1713
        %v1716 = vld [vmem:[#allocation7] sm:$0xff]
        %v1717 = vld [vmem:[#allocation7 + $0x8] sm:$0xff]
        %v1718 = vld [vmem:[#allocation7 + $0x10] sm:$0xff]
        %v1719 = vld [vmem:[#allocation7 + $0x18] sm:$0xff]
        %v1720 = vld [vmem:[%s15] sm:$0x1]
        %v1722 = vlaneseq
        %v1723 = vshrl.u32 %v1722, 7
        %v1724 = vsub.s32 0, %v1723
        %v1725 = vrot.slane %v1720, %v1724
        %v1728 = vsel %vm637, %v1715, 0
        %1730 = vmatprep.subr.mxu0 0.0
        %1731 = vmatpush1.msra.mxu0 %v1716
        %1732 = vmatprep.subr.mxu0 0.0
        %1733 = vmatpush1.msra.mxu0 %v1717
        %1734 = vmatprep.subr.mxu0 0.0
        %1735 = vmatpush1.msra.mxu0 %v1718
        %1736 = vmatprep.subr.mxu0 0.0
        %1737 = vmatpush1.msra.mxu0 %v1719
        %1738 = vmatprep.subr.mxu0 0.0
        %1739 = vmatpush1.msra.mxu0 0.0
        %1740 = vmatprep.subr.mxu0 0.0
        %1741 = vmatpush1.msra.mxu0 0.0
        %1742 = vmatprep.subr.mxu0 0.0
        %1743 = vmatpush1.msra.mxu0 0.0
        %1744 = vmatprep.subr.mxu0 0.0
        %1745 = vmatpush1.msra.mxu0 0.0
        %1746 = vmatprep.subr.mxu0 0.0
        %1747 = vmatpush1.msra.mxu0 0.0
        %1748 = vmatprep.subr.mxu0 0.0
        %1749 = vmatpush1.msra.mxu0 0.0
        %1750 = vmatprep.subr.mxu0 0.0
        %1751 = vmatpush1.msra.mxu0 0.0
        %1752 = vmatprep.subr.mxu0 0.0
        %1753 = vmatpush1.msra.mxu0 0.0
        %1754 = vmatprep.subr.mxu0 0.0
        %1755 = vmatpush1.msra.mxu0 0.0
        %1756 = vmatprep.subr.mxu0 0.0
        %1757 = vmatpush1.msra.mxu0 0.0
        %1758 = vmatprep.subr.mxu0 0.0
        %1759 = vmatpush1.msra.mxu0 0.0
        %1760 = vmatprep.subr.mxu0 0.0
        %1761 = vmatpush1.msra.mxu0 0.0
        %1762 = vmatprep.subr.mxu0 0.0
        %1763 = vmatpush1.msra.mxu0 0.0
        %1764 = vmatprep.subr.mxu0 0.0
        %1765 = vmatpush1.msra.mxu0 0.0
        %1766 = vmatprep.subr.mxu0 0.0
        %1767 = vmatpush1.msra.mxu0 0.0
        %1768 = vmatprep.subr.mxu0 0.0
        %1769 = vmatpush1.msra.mxu0 0.0
        %1770 = vmatprep.subr.mxu0 0.0
        %1771 = vmatpush1.msra.mxu0 0.0
        %1772 = vmatprep.subr.mxu0 0.0
        %1773 = vmatpush1.msra.mxu0 0.0
        %1774 = vmatprep.subr.mxu0 0.0
        %1775 = vmatpush1.msra.mxu0 0.0
        %1776 = vmatprep.subr.mxu0 0.0
        %1777 = vmatpush1.msra.mxu0 0.0
        %1778 = vmatprep.subr.mxu0 0.0
        %1779 = vmatpush1.msra.mxu0 0.0
        %1780 = vmatprep.subr.mxu0 0.0
        %1781 = vmatpush1.msra.mxu0 0.0
        %1782 = vmatprep.subr.mxu0 0.0
        %1783 = vmatpush1.msra.mxu0 0.0
        %1784 = vmatprep.subr.mxu0 0.0
        %1785 = vmatpush1.msra.mxu0 0.0
        %1786 = vmatprep.subr.mxu0 0.0
        %1787 = vmatpush1.msra.mxu0 0.0
        %1788 = vmatprep.subr.mxu0 0.0
        %1789 = vmatpush1.msra.mxu0 0.0
        %1790 = vmatprep.subr.mxu0 0.0
        %1791 = vmatpush1.msra.mxu0 0.0
        %1792 = vmatprep.subr.mxu0 0.0
        %1793 = vmatpush1.msra.mxu0 0.0
        %1794 = vmatprep.mubr.f32.mxu0 0.0
        %1795 = vmatmul.mubr.f32.gmra.mrb[0].mxu0 %v1728
        %v1796 = vpop.f32.mrb[0].mxu0
        %v1797 = vadd.f32 %v1725, %v1796
        %v1798 = vpop.f32.mrb[0].mxu0
        %1799 = vdwg.mxu0
        %v1800 = vmax.f32 %v1797, 0.0
        %v1801 = vld [vmem:[%s16] sm:$0xff]
        %v1802 = vld [vmem:[%s16 + $0x8] sm:$0xff]
        %v1803 = vld [vmem:[%s16 + $0x10] sm:$0xff]
        %v1804 = vld [vmem:[%s16 + $0x18] sm:$0xff]
        %v1805 = vld [vmem:[%s16 + $0x20] sm:$0xff]
        %v1806 = vld [vmem:[%s16 + $0x28] sm:$0xff]
        %v1807 = vld [vmem:[%s16 + $0x30] sm:$0xff]
        %v1808 = vld [vmem:[%s16 + $0x38] sm:$0xff]
        %v1809 = vld [vmem:[%s17] sm:$0x1]
        %v1811 = vlaneseq
        %v1812 = vshrl.u32 %v1811, 7
        %v1813 = vsub.s32 0, %v1812
        %v1814 = vrot.slane %v1809, %v1813
        %vm1816 = vcmask 523264
        %v1818 = vsel %vm1816, %v1800, 0
        %1820 = vmatprep.subr.mxu0 0.0
        %1821 = vmatpush1.msra.mxu0 %v1801
        %1822 = vmatprep.subr.mxu0 0.0
        %1823 = vmatpush1.msra.mxu0 %v1802
        %1824 = vmatprep.subr.mxu0 0.0
        %1825 = vmatpush1.msra.mxu0 %v1803
        %1826 = vmatprep.subr.mxu0 0.0
        %1827 = vmatpush1.msra.mxu0 %v1804
        %1828 = vmatprep.subr.mxu0 0.0
        %1829 = vmatpush1.msra.mxu0 %v1805
        %1830 = vmatprep.subr.mxu0 0.0
        %1831 = vmatpush1.msra.mxu0 %v1806
        %1832 = vmatprep.subr.mxu0 0.0
        %1833 = vmatpush1.msra.mxu0 %v1807
        %1834 = vmatprep.subr.mxu0 0.0
        %1835 = vmatpush1.msra.mxu0 %v1808
        %1836 = vmatprep.subr.mxu0 0.0
        %1837 = vmatpush1.msra.mxu0 0.0
        %1838 = vmatprep.subr.mxu0 0.0
        %1839 = vmatpush1.msra.mxu0 0.0
        %1840 = vmatprep.subr.mxu0 0.0
        %1841 = vmatpush1.msra.mxu0 0.0
        %1842 = vmatprep.subr.mxu0 0.0
        %1843 = vmatpush1.msra.mxu0 0.0
        %1844 = vmatprep.subr.mxu0 0.0
        %1845 = vmatpush1.msra.mxu0 0.0
        %1846 = vmatprep.subr.mxu0 0.0
        %1847 = vmatpush1.msra.mxu0 0.0
        %1848 = vmatprep.subr.mxu0 0.0
        %1849 = vmatpush1.msra.mxu0 0.0
        %1850 = vmatprep.subr.mxu0 0.0
        %1851 = vmatpush1.msra.mxu0 0.0
        %1852 = vmatprep.subr.mxu0 0.0
        %1853 = vmatpush1.msra.mxu0 0.0
        %1854 = vmatprep.subr.mxu0 0.0
        %1855 = vmatpush1.msra.mxu0 0.0
        %1856 = vmatprep.subr.mxu0 0.0
        %1857 = vmatpush1.msra.mxu0 0.0
        %1858 = vmatprep.subr.mxu0 0.0
        %1859 = vmatpush1.msra.mxu0 0.0
        %1860 = vmatprep.subr.mxu0 0.0
        %1861 = vmatpush1.msra.mxu0 0.0
        %1862 = vmatprep.subr.mxu0 0.0
        %1863 = vmatpush1.msra.mxu0 0.0
        %1864 = vmatprep.subr.mxu0 0.0
        %1865 = vmatpush1.msra.mxu0 0.0
        %1866 = vmatprep.subr.mxu0 0.0
        %1867 = vmatpush1.msra.mxu0 0.0
        %1868 = vmatprep.subr.mxu0 0.0
        %1869 = vmatpush1.msra.mxu0 0.0
        %1870 = vmatprep.subr.mxu0 0.0
        %1871 = vmatpush1.msra.mxu0 0.0
        %1872 = vmatprep.subr.mxu0 0.0
        %1873 = vmatpush1.msra.mxu0 0.0
        %1874 = vmatprep.subr.mxu0 0.0
        %1875 = vmatpush1.msra.mxu0 0.0
        %1876 = vmatprep.subr.mxu0 0.0
        %1877 = vmatpush1.msra.mxu0 0.0
        %1878 = vmatprep.subr.mxu0 0.0
        %1879 = vmatpush1.msra.mxu0 0.0
        %1880 = vmatprep.subr.mxu0 0.0
        %1881 = vmatpush1.msra.mxu0 0.0
        %1882 = vmatprep.subr.mxu0 0.0
        %1883 = vmatpush1.msra.mxu0 0.0
        %1884 = vmatprep.mubr.f32.mxu0 0.0
        %1885 = vmatmul.mubr.f32.gmra.mrb[0].mxu0 %v1818
        %v1886 = vpop.f32.mrb[0].mxu0
        %v1887 = vadd.f32 %v1814, %v1886
        %v1888 = vpop.f32.mrb[0].mxu0
        %1889 = vdwg.mxu0
        %v1890 = vadd.f32 %v1686, %v1887
        %1891 = vst.msk [vmem:[%s630] sm:$0xff] %vm637, %v1890
        %s1892 = sand.u32 %s432, 1
        %s1893 = scalar_lea.sflag [#allocation4], %s1892
        %s1894 = sand.u32 %s432, 1
        %s1895 = smul.addr %s1894, 8
        %s1896 = scalar_lea.vmem [#allocation8], %s1895
        // Predicated region
        $region105: #{tpu_custom_call.1} parent=91 // pred_check
          %p1897 = pneg %p442
        $region106: #{tpu_custom_call.1} parent=91 // pred_check_branch
          %1899 = sbr.rel (%p1897) target = $region108
        $region107: #{tpu_custom_call.1} parent=91 // pred_region
          %s1901 = ssub.s32 128, 128
          %1902 = vsyncadd %s1893, %s1901
          %s1903 = smul.addr %s36, 128
          %s1904 = scalar_lea.hbm %s18, %s1903
          %s1906 = sshll.u32 %s1896, 4
          %s1907 = int_to_ptr.vmem [resolvable:$true] %s1906
          %1909 = dma.vmem_to_hbm [thread:$0]  %s1907, 128, %s1904, %s1893
        $region108: #{tpu_custom_call.1} parent=91 // pred_fallthru
          _
      $region92: #{tpu_custom_call.1} parent=5 // pred_fallthru
        _
      %p1910 = scmp.le.s32.totalorder 2, %s31
      // Predicated region
      $region109: #{tpu_custom_call.1} parent=5 // pred_check
        %p1911 = pneg %p1910
      $region110: #{tpu_custom_call.1} parent=5 // pred_check_branch
        %1913 = sbr.rel (%p1911) target = $region112
      $region111: #{tpu_custom_call.1} parent=5 // pred_region
        %s1914 = ssub.s32 %s31, 2
        // Predicated region
        $region113: #{tpu_custom_call.1} parent=111 // pred_check
          %p1915 = pneg %p448
        $region114: #{tpu_custom_call.1} parent=111 // pred_check_branch
          %1917 = sbr.rel (%p1915) target = $region116
        $region115: #{tpu_custom_call.1} parent=111 // pred_region
          %s1918 = sand.u32 %s433, 1
          %s1919 = scalar_lea.sflag [#allocation4], %s1918
          %s1920 = sand.u32 %s433, 1
          %s1921 = smul.addr %s1920, 8
          %s1922 = scalar_lea.vmem [#allocation8], %s1921
          %1923 = dma.done %s1919, 128
        $region116: #{tpu_custom_call.1} parent=111 // pred_fallthru
          _
      $region112: #{tpu_custom_call.1} parent=5 // pred_fallthru
        _
    $region6: #{tpu_custom_call.1} parent=1 // loop_footer
      %s35 = sadd.s32 1, %s31
    $region7: #{tpu_custom_call.1} parent=1 // loop_footer_branch
      %30 = sbr.rel target = $region3
    $region8: #{tpu_custom_call.1} parent=1 // loop_exit
      _
    %1924 = vsyncpa [#allocation3], 1
    %s1925 = scalar_lea.sflag [#allocation3], 1
    %1926 = vsyncpa %s1925, 1
    %1927 = vsyncpa [#allocation6], 1
    %1928 = vsyncpa [#allocation4], 1
    %s1929 = scalar_lea.sflag [#allocation4], 1
    %1930 = vsyncpa %s1929, 1

</llo_original>
